<compile_context>
chip_gen: v7x
topology: tpu7x:2x2x1
jax: 0.10.0
libtpu: 0.0.40
codegen_flags: <defaults>
</compile_context>

<pallas_src>
import jax
import jax.numpy as jnp
from jax.experimental import pallas as pl
from jax.experimental.pallas import tpu as pltpu


def _make_kernel(Nb, C, D, W, HWp, Cout, inv_vol):
    """Kernel over one (Nb, C, D, HWp) input block -> (Nb, Cout, D, HWp) output block."""

    def kernel(x_ref, m_ref, wt_ref, a_ref, b_ref, o_ref):
        # boundary masks, (D, HWp) each: [d_lo, d_hi, h_lo, h_hi, w_lo, w_hi]
        m_dlo = m_ref[0]
        m_dhi = m_ref[1]
        m_hlo = m_ref[2]
        m_hhi = m_ref[3]
        m_wlo = m_ref[4]
        m_whi = m_ref[5]

        c0 = 0.7978845608028654  # sqrt(2/pi)
        c1 = 0.044715

        for b in range(Nb):
            # ---- per-channel: 3 axial depthwise convs (7 rolled taps) + global mean ----
            y = []
            for c in range(C):
                xc = x_ref[b, c]                                   # (D, HWp) f32

                # AdaptiveAvgPool3d(1): per-channel mean over the real D*H*W volume
                # (pad lanes are zero so they do not perturb the sum).
                s = jnp.sum(jnp.sum(xc, axis=1, keepdims=True), axis=0, keepdims=True)
                mean_c = s * inv_vol                               # (1, 1)

                # tap order: centre, d-1, d+1, h-1, h+1, w-1, w+1 (weights in SMEM).
                acc = xc * wt_ref[0, c]
                acc = acc + pltpu.roll(xc, 1, 0) * m_dlo * wt_ref[1, c]         # d-1
                acc = acc + pltpu.roll(xc, D - 1, 0) * m_dhi * wt_ref[2, c]     # d+1
                acc = acc + pltpu.roll(xc, W, 1) * m_hlo * wt_ref[3, c]         # h-1
                acc = acc + pltpu.roll(xc, HWp - W, 1) * m_hhi * wt_ref[4, c]   # h+1
                acc = acc + pltpu.roll(xc, 1, 1) * m_wlo * wt_ref[5, c]         # w-1
                acc = acc + pltpu.roll(xc, HWp - 1, 1) * m_whi * wt_ref[6, c]   # w+1

                y.append(acc + mean_c)                             # residual pooled mean

            # ---- pointwise 1x1x1 conv + folded BatchNorm(eval) + GELU(tanh) ----
            # VPU FMA path (C*Cout is tiny here). TODO(synk): MXU dot for large C*Cout.
            for o in range(Cout):
                r = y[0] * a_ref[o, 0]
                for c in range(1, C):
                    r = r + y[c] * a_ref[o, c]
                r = r + b_ref[o]
                t = jnp.tanh(c0 * (r + c1 * r * r * r))
                o_ref[b, o] = 0.5 * r * (1.0 + t)

    return kernel


def res_da_conv3d(x, params):
    """Forward of ResDAConv3d.  x: (N, C, D, H, W) float32 -> (N, Cout, D, H, W)."""
    N, C, D, H, W = x.shape
    K = params["wd"].shape[2]
    assert K == 3, "only the module default kernel_size=3 / stride=1 / depthwise is implemented"
    Cout = params["pw"].shape[0]
    HW = H * W
    HWp = ((HW + 127) // 128) * 128          # lane-density guard (pad to 128-multiple)

    xf = x.reshape(N, C, D, HW).astype(jnp.float32)
    if HWp != HW:
        xf = jnp.pad(xf, ((0, 0), (0, 0), (0, 0), (0, HWp - HW)))

    # ---- per-channel axial tap weights -> SMEM (7, C) ----
    wd = params["wd"].reshape(C, K).astype(jnp.float32)
    wh = params["wh"].reshape(C, K).astype(jnp.float32)
    ww = params["ww"].reshape(C, K).astype(jnp.float32)
    w_taps = jnp.stack(
        [wd[:, 1] + wh[:, 1] + ww[:, 1],     # combined centre taps
         wd[:, 0], wd[:, 2],                 # d-1, d+1
         wh[:, 0], wh[:, 2],                 # h-1, h+1
         ww[:, 0], ww[:, 2]], axis=0)        # w-1, w+1           -> (7, C)

    # ---- boundary masks for the rolled taps (6, D, HWp); pad lanes are don't-care ----
    lane = jnp.arange(HWp, dtype=jnp.int32)
    wpos = lane % W
    row = jnp.arange(D, dtype=jnp.int32)[:, None]
    m_dlo = jnp.broadcast_to((row > 0).astype(jnp.float32), (D, HWp))
    m_dhi = jnp.broadcast_to((row < D - 1).astype(jnp.float32), (D, HWp))
    m_hlo = jnp.broadcast_to((lane >= W).astype(jnp.float32)[None, :], (D, HWp))
    m_hhi = jnp.broadcast_to((lane < HW - W).astype(jnp.float32)[None, :], (D, HWp))
    m_wlo = jnp.broadcast_to((wpos > 0).astype(jnp.float32)[None, :], (D, HWp))
    m_whi = jnp.broadcast_to((wpos < W - 1).astype(jnp.float32)[None, :], (D, HWp))
    masks = jnp.stack([m_dlo, m_dhi, m_hlo, m_hhi, m_wlo, m_whi], axis=0)

    # ---- fold pointwise conv + eval-mode BatchNorm + depthwise biases ----
    #   out = gelu(A @ (axial_sum_nobias + x_avg) + B)
    pw = params["pw"].reshape(Cout, C).astype(jnp.float32)
    pb = params["pb"].astype(jnp.float32)
    scale = (params["bn_gamma"]
             / jnp.sqrt(params["bn_var"] + params["bn_eps"])).astype(jnp.float32)
    A = pw * scale[:, None]                                            # (Cout, C)
    bias_dw = (params["bd"] + params["bh"] + params["bw"]).astype(jnp.float32)
    B = ((pb - params["bn_mean"]) * scale + params["bn_beta"]
         + A @ bias_dw).astype(jnp.float32)                            # (Cout,)

    # ---- batch grouping: fatter per-step blocks, but keep >= min(N, 4) grid steps ----
    bytes_per_batch = 4 * D * HWp * (C + Cout)
    nb_cap = max(1, N // 4)
    Nb = 1
    for cand in range(1, nb_cap + 1):
        if N % cand == 0 and cand * bytes_per_batch <= (6 << 20):
            Nb = cand
    steps = N // Nb

    mask_bytes = 4 * 6 * D * HWp
    vmem_limit = int(min(48 << 20,
                         max(16 << 20,
                             4 * Nb * bytes_per_batch + 2 * mask_bytes + (4 << 20))))

    kernel = _make_kernel(Nb, C, D, W, HWp, Cout, 1.0 / float(D * H * W))

    out = pl.pallas_call(
        kernel,
        out_shape=jax.ShapeDtypeStruct((N, Cout, D, HWp), jnp.float32),
        grid=(steps,),
        in_specs=[
            pl.BlockSpec((Nb, C, D, HWp), lambda n: (n, 0, 0, 0)),
            pl.BlockSpec((6, D, HWp), lambda n: (0, 0, 0)),
            pl.BlockSpec((7, C), lambda n: (0, 0),
                         memory_space=pltpu.MemorySpace.SMEM),
            pl.BlockSpec((Cout, C), lambda n: (0, 0),
                         memory_space=pltpu.MemorySpace.SMEM),
            pl.BlockSpec((Cout,), lambda n: (0,),
                         memory_space=pltpu.MemorySpace.SMEM),
        ],
        out_specs=pl.BlockSpec((Nb, Cout, D, HWp), lambda n: (n, 0, 0, 0)),
        compiler_params=pltpu.CompilerParams(
            dimension_semantics=("parallel",),
            vmem_limit_bytes=vmem_limit),
    )(xf, masks, w_taps, A, B)

    out = out[..., :HW]
    return out.reshape(N, Cout, D, H, W)


def _ref_forward(x, p):
    """Pure-JAX reference matching the PyTorch module's forward (NCDHW)."""
    N, C, D, H, W = x.shape
    K = p["wd"].shape[2]
    Cout = p["pw"].shape[0]
    wd = p["wd"].reshape(C, K)
    wh = p["wh"].reshape(C, K)
    ww = p["ww"].reshape(C, K)

    def axial(y, w, b, axis):
        pd = K // 2
        pad = [(0, 0)] * 5
        pad[axis] = (pd, pd)
        yp = jnp.pad(y, pad)
        L = y.shape[axis]
        out = jnp.zeros_like(y)
        for k in range(K):
            sl = [slice(None)] * 5
            sl[axis] = slice(k, k + L)
            out = out + yp[tuple(sl)] * w[:, k][None, :, None, None, None]
        return out + b[None, :, None, None, None]

    x_avg = jnp.mean(x, axis=(2, 3, 4), keepdims=True)
    s = (axial(x, wd, p["bd"], 2) + axial(x, wh, p["bh"], 3)
         + axial(x, ww, p["bw"], 4))
    y = x_avg + s
    y = jnp.einsum("ncdhw,oc->nodhw", y, p["pw"].reshape(Cout, C))
    y = y + p["pb"][None, :, None, None, None]
    scale = p["bn_gamma"] / jnp.sqrt(p["bn_var"] + p["bn_eps"])
    y = ((y - p["bn_mean"][None, :, None, None, None])
         * scale[None, :, None, None, None]
         + p["bn_beta"][None, :, None, None, None])
    return jax.nn.gelu(y, approximate=True)


if __name__ == "__main__":
    N, Cin, Cout, D, H, W, K = 2, 4, 8, 16, 16, 16, 3
    key = jax.random.PRNGKey(0)
    ks = jax.random.split(key, 13)
    params = {
        # depthwise axial conv weights in their native PyTorch shapes
        "wd": jax.random.normal(ks[0], (Cin, 1, K, 1, 1), jnp.float32) * 0.3,
        "bd": jax.random.normal(ks[1], (Cin,), jnp.float32) * 0.1,
        "wh": jax.random.normal(ks[2], (Cin, 1, 1, K, 1), jnp.float32) * 0.3,
        "bh": jax.random.normal(ks[3], (Cin,), jnp.float32) * 0.1,
        "ww": jax.random.normal(ks[4], (Cin, 1, 1, 1, K), jnp.float32) * 0.3,
        "bw": jax.random.normal(ks[5], (Cin,), jnp.float32) * 0.1,
        # pointwise conv
        "pw": jax.random.normal(ks[6], (Cout, Cin, 1, 1, 1), jnp.float32) * 0.3,
        "pb": jax.random.normal(ks[7], (Cout,), jnp.float32) * 0.1,
        # BatchNorm3d (eval-mode running stats)
        "bn_gamma": 1.0 + 0.1 * jax.random.normal(ks[8], (Cout,), jnp.float32),
        "bn_beta": 0.1 * jax.random.normal(ks[9], (Cout,), jnp.float32),
        "bn_mean": 0.1 * jax.random.normal(ks[10], (Cout,), jnp.float32),
        "bn_var": 0.5 + jnp.abs(jax.random.normal(ks[11], (Cout,), jnp.float32)),
        "bn_eps": 1e-5,
    }
    x = jax.random.normal(ks[12], (N, Cin, D, H, W), jnp.float32)

    out = jax.block_until_ready(res_da_conv3d(x, params))
    ref = jax.block_until_ready(_ref_forward(x, params))

    assert out.shape == (N, Cout, D, H, W), out.shape
    max_err = float(jnp.max(jnp.abs(out - ref)))
    assert max_err < 2e-3, f"mismatch vs reference: max_err={max_err}"
    print("KERNEL_OK")
</pallas_src>

<mosaic_0001>
module attributes {stable_mosaic.version = 11 : i64} {
  func.func @kernel(%arg0: i32, %arg1: memref<1x4x16x256xf32, #tpu.memory_space<vmem>>, %arg2: memref<6x16x256xf32, #tpu.memory_space<vmem>>, %arg3: memref<7x4xf32, #tpu.memory_space<smem>>, %arg4: memref<8x4xf32, #tpu.memory_space<smem>>, %arg5: memref<8xf32, #tpu.memory_space<smem>>, %arg6: memref<1x8x16x256xf32, #tpu.memory_space<vmem>>) attributes {dimension_semantics = [#tpu.dimension_semantics<parallel>], iteration_bounds = array<i64: 2>, scalar_prefetch = 0 : i64, scratch_operands = 0 : i64, tpu.core_type = #tpu.core_type<tc>, window_params = [{transform_indices = @transform_0, window_bounds = array<i64: 1, 4, 16, 256>}, {pipeline_mode = #tpu.pipeline_mode<synchronous>, transform_indices = @transform_1, window_bounds = array<i64: 6, 16, 256>}, {transform_indices = @transform_2, window_bounds = array<i64: 7, 4>}, {transform_indices = @transform_3, window_bounds = array<i64: 8, 4>}, {transform_indices = @transform_4, window_bounds = array<i64: 8>}, {transform_indices = @transform_5, window_bounds = array<i64: 1, 8, 16, 256>}]} {
    %c0 = arith.constant 0 : index
    %c0_0 = arith.constant 0 : index
    %c0_1 = arith.constant 0 : index
    %0 = vector.load %arg2[%c0, %c0_0, %c0_1] : memref<6x16x256xf32, #tpu.memory_space<vmem>>, vector<1x16x256xf32>
    %1 = vector.shape_cast %0 : vector<1x16x256xf32> to vector<16x256xf32>
    %c1 = arith.constant 1 : index
    %c0_2 = arith.constant 0 : index
    %c0_3 = arith.constant 0 : index
    %2 = vector.load %arg2[%c1, %c0_2, %c0_3] : memref<6x16x256xf32, #tpu.memory_space<vmem>>, vector<1x16x256xf32>
    %3 = vector.shape_cast %2 : vector<1x16x256xf32> to vector<16x256xf32>
    %c2 = arith.constant 2 : index
    %c0_4 = arith.constant 0 : index
    %c0_5 = arith.constant 0 : index
    %4 = vector.load %arg2[%c2, %c0_4, %c0_5] : memref<6x16x256xf32, #tpu.memory_space<vmem>>, vector<1x16x256xf32>
    %5 = vector.shape_cast %4 : vector<1x16x256xf32> to vector<16x256xf32>
    %c3 = arith.constant 3 : index
    %c0_6 = arith.constant 0 : index
    %c0_7 = arith.constant 0 : index
    %6 = vector.load %arg2[%c3, %c0_6, %c0_7] : memref<6x16x256xf32, #tpu.memory_space<vmem>>, vector<1x16x256xf32>
    %7 = vector.shape_cast %6 : vector<1x16x256xf32> to vector<16x256xf32>
    %c4 = arith.constant 4 : index
    %c0_8 = arith.constant 0 : index
    %c0_9 = arith.constant 0 : index
    %8 = vector.load %arg2[%c4, %c0_8, %c0_9] : memref<6x16x256xf32, #tpu.memory_space<vmem>>, vector<1x16x256xf32>
    %9 = vector.shape_cast %8 : vector<1x16x256xf32> to vector<16x256xf32>
    %c5 = arith.constant 5 : index
    %c0_10 = arith.constant 0 : index
    %c0_11 = arith.constant 0 : index
    %10 = vector.load %arg2[%c5, %c0_10, %c0_11] : memref<6x16x256xf32, #tpu.memory_space<vmem>>, vector<1x16x256xf32>
    %11 = vector.shape_cast %10 : vector<1x16x256xf32> to vector<16x256xf32>
    %c0_12 = arith.constant 0 : index
    %c0_13 = arith.constant 0 : index
    %c0_14 = arith.constant 0 : index
    %c0_15 = arith.constant 0 : index
    %12 = vector.load %arg1[%c0_12, %c0_13, %c0_14, %c0_15] : memref<1x4x16x256xf32, #tpu.memory_space<vmem>>, vector<1x1x16x256xf32>
    %13 = vector.shape_cast %12 : vector<1x1x16x256xf32> to vector<16x256xf32>
    %cst = arith.constant dense<0.000000e+00> : vector<16xf32>
    %14 = vector.multi_reduction <add>, %13, %cst [1] : vector<16x256xf32> to vector<16xf32>
    %15 = vector.shape_cast %14 : vector<16xf32> to vector<16x1xf32>
    %cst_16 = arith.constant dense<0.000000e+00> : vector<1xf32>
    %16 = vector.multi_reduction <add>, %15, %cst_16 [0] : vector<16x1xf32> to vector<1xf32>
    %17 = vector.shape_cast %16 : vector<1xf32> to vector<1x1xf32>
    %cst_17 = arith.constant 2.44140625E-4 : f32
    %18 = vector.broadcast %cst_17 : f32 to vector<1x1xf32>
    %19 = arith.mulf %17, %18 : vector<1x1xf32>
    %c0_18 = arith.constant 0 : index
    %c0_19 = arith.constant 0 : index
    %20 = memref.load %arg3[%c0_18, %c0_19] : memref<7x4xf32, #tpu.memory_space<smem>>
    %21 = vector.broadcast %20 : f32 to vector<16x256xf32>
    %22 = arith.mulf %13, %21 : vector<16x256xf32>
    %c1_i32 = arith.constant 1 : i32
    %23 = tpu.dynamic_rotate %13 by %c1_i32 dim 0 : vector<16x256xf32>, i32 -> vector<16x256xf32>
    %24 = arith.mulf %23, %1 : vector<16x256xf32>
    %c1_20 = arith.constant 1 : index
    %c0_21 = arith.constant 0 : index
    %25 = memref.load %arg3[%c1_20, %c0_21] : memref<7x4xf32, #tpu.memory_space<smem>>
    %26 = vector.broadcast %25 : f32 to vector<16x256xf32>
    %27 = arith.mulf %24, %26 : vector<16x256xf32>
    %28 = arith.addf %22, %27 : vector<16x256xf32>
    %c15_i32 = arith.constant 15 : i32
    %29 = tpu.dynamic_rotate %13 by %c15_i32 dim 0 : vector<16x256xf32>, i32 -> vector<16x256xf32>
    %30 = arith.mulf %29, %3 : vector<16x256xf32>
    %c2_22 = arith.constant 2 : index
    %c0_23 = arith.constant 0 : index
    %31 = memref.load %arg3[%c2_22, %c0_23] : memref<7x4xf32, #tpu.memory_space<smem>>
    %32 = vector.broadcast %31 : f32 to vector<16x256xf32>
    %33 = arith.mulf %30, %32 : vector<16x256xf32>
    %34 = arith.addf %28, %33 : vector<16x256xf32>
    %c16_i32 = arith.constant 16 : i32
    %35 = tpu.dynamic_rotate %13 by %c16_i32 dim 1 : vector<16x256xf32>, i32 -> vector<16x256xf32>
    %36 = arith.mulf %35, %5 : vector<16x256xf32>
    %c3_24 = arith.constant 3 : index
    %c0_25 = arith.constant 0 : index
    %37 = memref.load %arg3[%c3_24, %c0_25] : memref<7x4xf32, #tpu.memory_space<smem>>
    %38 = vector.broadcast %37 : f32 to vector<16x256xf32>
    %39 = arith.mulf %36, %38 : vector<16x256xf32>
    %40 = arith.addf %34, %39 : vector<16x256xf32>
    %c240_i32 = arith.constant 240 : i32
    %41 = tpu.dynamic_rotate %13 by %c240_i32 dim 1 : vector<16x256xf32>, i32 -> vector<16x256xf32>
    %42 = arith.mulf %41, %7 : vector<16x256xf32>
    %c4_26 = arith.constant 4 : index
    %c0_27 = arith.constant 0 : index
    %43 = memref.load %arg3[%c4_26, %c0_27] : memref<7x4xf32, #tpu.memory_space<smem>>
    %44 = vector.broadcast %43 : f32 to vector<16x256xf32>
    %45 = arith.mulf %42, %44 : vector<16x256xf32>
    %46 = arith.addf %40, %45 : vector<16x256xf32>
    %c1_i32_28 = arith.constant 1 : i32
    %47 = tpu.dynamic_rotate %13 by %c1_i32_28 dim 1 : vector<16x256xf32>, i32 -> vector<16x256xf32>
    %48 = arith.mulf %47, %9 : vector<16x256xf32>
    %c5_29 = arith.constant 5 : index
    %c0_30 = arith.constant 0 : index
    %49 = memref.load %arg3[%c5_29, %c0_30] : memref<7x4xf32, #tpu.memory_space<smem>>
    %50 = vector.broadcast %49 : f32 to vector<16x256xf32>
    %51 = arith.mulf %48, %50 : vector<16x256xf32>
    %52 = arith.addf %46, %51 : vector<16x256xf32>
    %c255_i32 = arith.constant 255 : i32
    %53 = tpu.dynamic_rotate %13 by %c255_i32 dim 1 : vector<16x256xf32>, i32 -> vector<16x256xf32>
    %54 = arith.mulf %53, %11 : vector<16x256xf32>
    %c6 = arith.constant 6 : index
    %c0_31 = arith.constant 0 : index
    %55 = memref.load %arg3[%c6, %c0_31] : memref<7x4xf32, #tpu.memory_space<smem>>
    %56 = vector.broadcast %55 : f32 to vector<16x256xf32>
    %57 = arith.mulf %54, %56 : vector<16x256xf32>
    %58 = arith.addf %52, %57 : vector<16x256xf32>
    %59 = vector.broadcast %19 : vector<1x1xf32> to vector<16x256xf32>
    %60 = arith.addf %58, %59 : vector<16x256xf32>
    %c0_32 = arith.constant 0 : index
    %c1_33 = arith.constant 1 : index
    %c0_34 = arith.constant 0 : index
    %c0_35 = arith.constant 0 : index
    %61 = vector.load %arg1[%c0_32, %c1_33, %c0_34, %c0_35] : memref<1x4x16x256xf32, #tpu.memory_space<vmem>>, vector<1x1x16x256xf32>
    %62 = vector.shape_cast %61 : vector<1x1x16x256xf32> to vector<16x256xf32>
    %cst_36 = arith.constant dense<0.000000e+00> : vector<16xf32>
    %63 = vector.multi_reduction <add>, %62, %cst_36 [1] : vector<16x256xf32> to vector<16xf32>
    %64 = vector.shape_cast %63 : vector<16xf32> to vector<16x1xf32>
    %cst_37 = arith.constant dense<0.000000e+00> : vector<1xf32>
    %65 = vector.multi_reduction <add>, %64, %cst_37 [0] : vector<16x1xf32> to vector<1xf32>
    %66 = vector.shape_cast %65 : vector<1xf32> to vector<1x1xf32>
    %cst_38 = arith.constant 2.44140625E-4 : f32
    %67 = vector.broadcast %cst_38 : f32 to vector<1x1xf32>
    %68 = arith.mulf %66, %67 : vector<1x1xf32>
    %c0_39 = arith.constant 0 : index
    %c1_40 = arith.constant 1 : index
    %69 = memref.load %arg3[%c0_39, %c1_40] : memref<7x4xf32, #tpu.memory_space<smem>>
    %70 = vector.broadcast %69 : f32 to vector<16x256xf32>
    %71 = arith.mulf %62, %70 : vector<16x256xf32>
    %c1_i32_41 = arith.constant 1 : i32
    %72 = tpu.dynamic_rotate %62 by %c1_i32_41 dim 0 : vector<16x256xf32>, i32 -> vector<16x256xf32>
    %73 = arith.mulf %72, %1 : vector<16x256xf32>
    %c1_42 = arith.constant 1 : index
    %c1_43 = arith.constant 1 : index
    %74 = memref.load %arg3[%c1_42, %c1_43] : memref<7x4xf32, #tpu.memory_space<smem>>
    %75 = vector.broadcast %74 : f32 to vector<16x256xf32>
    %76 = arith.mulf %73, %75 : vector<16x256xf32>
    %77 = arith.addf %71, %76 : vector<16x256xf32>
    %c15_i32_44 = arith.constant 15 : i32
    %78 = tpu.dynamic_rotate %62 by %c15_i32_44 dim 0 : vector<16x256xf32>, i32 -> vector<16x256xf32>
    %79 = arith.mulf %78, %3 : vector<16x256xf32>
    %c2_45 = arith.constant 2 : index
    %c1_46 = arith.constant 1 : index
    %80 = memref.load %arg3[%c2_45, %c1_46] : memref<7x4xf32, #tpu.memory_space<smem>>
    %81 = vector.broadcast %80 : f32 to vector<16x256xf32>
    %82 = arith.mulf %79, %81 : vector<16x256xf32>
    %83 = arith.addf %77, %82 : vector<16x256xf32>
    %c16_i32_47 = arith.constant 16 : i32
    %84 = tpu.dynamic_rotate %62 by %c16_i32_47 dim 1 : vector<16x256xf32>, i32 -> vector<16x256xf32>
    %85 = arith.mulf %84, %5 : vector<16x256xf32>
    %c3_48 = arith.constant 3 : index
    %c1_49 = arith.constant 1 : index
    %86 = memref.load %arg3[%c3_48, %c1_49] : memref<7x4xf32, #tpu.memory_space<smem>>
    %87 = vector.broadcast %86 : f32 to vector<16x256xf32>
    %88 = arith.mulf %85, %87 : vector<16x256xf32>
    %89 = arith.addf %83, %88 : vector<16x256xf32>
    %c240_i32_50 = arith.constant 240 : i32
    %90 = tpu.dynamic_rotate %62 by %c240_i32_50 dim 1 : vector<16x256xf32>, i32 -> vector<16x256xf32>
    %91 = arith.mulf %90, %7 : vector<16x256xf32>
    %c4_51 = arith.constant 4 : index
    %c1_52 = arith.constant 1 : index
    %92 = memref.load %arg3[%c4_51, %c1_52] : memref<7x4xf32, #tpu.memory_space<smem>>
    %93 = vector.broadcast %92 : f32 to vector<16x256xf32>
    %94 = arith.mulf %91, %93 : vector<16x256xf32>
    %95 = arith.addf %89, %94 : vector<16x256xf32>
    %c1_i32_53 = arith.constant 1 : i32
    %96 = tpu.dynamic_rotate %62 by %c1_i32_53 dim 1 : vector<16x256xf32>, i32 -> vector<16x256xf32>
    %97 = arith.mulf %96, %9 : vector<16x256xf32>
    %c5_54 = arith.constant 5 : index
    %c1_55 = arith.constant 1 : index
    %98 = memref.load %arg3[%c5_54, %c1_55] : memref<7x4xf32, #tpu.memory_space<smem>>
    %99 = vector.broadcast %98 : f32 to vector<16x256xf32>
    %100 = arith.mulf %97, %99 : vector<16x256xf32>
    %101 = arith.addf %95, %100 : vector<16x256xf32>
    %c255_i32_56 = arith.constant 255 : i32
    %102 = tpu.dynamic_rotate %62 by %c255_i32_56 dim 1 : vector<16x256xf32>, i32 -> vector<16x256xf32>
    %103 = arith.mulf %102, %11 : vector<16x256xf32>
    %c6_57 = arith.constant 6 : index
    %c1_58 = arith.constant 1 : index
    %104 = memref.load %arg3[%c6_57, %c1_58] : memref<7x4xf32, #tpu.memory_space<smem>>
    %105 = vector.broadcast %104 : f32 to vector<16x256xf32>
    %106 = arith.mulf %103, %105 : vector<16x256xf32>
    %107 = arith.addf %101, %106 : vector<16x256xf32>
    %108 = vector.broadcast %68 : vector<1x1xf32> to vector<16x256xf32>
    %109 = arith.addf %107, %108 : vector<16x256xf32>
    %c0_59 = arith.constant 0 : index
    %c2_60 = arith.constant 2 : index
    %c0_61 = arith.constant 0 : index
    %c0_62 = arith.constant 0 : index
    %110 = vector.load %arg1[%c0_59, %c2_60, %c0_61, %c0_62] : memref<1x4x16x256xf32, #tpu.memory_space<vmem>>, vector<1x1x16x256xf32>
    %111 = vector.shape_cast %110 : vector<1x1x16x256xf32> to vector<16x256xf32>
    %cst_63 = arith.constant dense<0.000000e+00> : vector<16xf32>
    %112 = vector.multi_reduction <add>, %111, %cst_63 [1] : vector<16x256xf32> to vector<16xf32>
    %113 = vector.shape_cast %112 : vector<16xf32> to vector<16x1xf32>
    %cst_64 = arith.constant dense<0.000000e+00> : vector<1xf32>
    %114 = vector.multi_reduction <add>, %113, %cst_64 [0] : vector<16x1xf32> to vector<1xf32>
    %115 = vector.shape_cast %114 : vector<1xf32> to vector<1x1xf32>
    %cst_65 = arith.constant 2.44140625E-4 : f32
    %116 = vector.broadcast %cst_65 : f32 to vector<1x1xf32>
    %117 = arith.mulf %115, %116 : vector<1x1xf32>
    %c0_66 = arith.constant 0 : index
    %c2_67 = arith.constant 2 : index
    %118 = memref.load %arg3[%c0_66, %c2_67] : memref<7x4xf32, #tpu.memory_space<smem>>
    %119 = vector.broadcast %118 : f32 to vector<16x256xf32>
    %120 = arith.mulf %111, %119 : vector<16x256xf32>
    %c1_i32_68 = arith.constant 1 : i32
    %121 = tpu.dynamic_rotate %111 by %c1_i32_68 dim 0 : vector<16x256xf32>, i32 -> vector<16x256xf32>
    %122 = arith.mulf %121, %1 : vector<16x256xf32>
    %c1_69 = arith.constant 1 : index
    %c2_70 = arith.constant 2 : index
    %123 = memref.load %arg3[%c1_69, %c2_70] : memref<7x4xf32, #tpu.memory_space<smem>>
    %124 = vector.broadcast %123 : f32 to vector<16x256xf32>
    %125 = arith.mulf %122, %124 : vector<16x256xf32>
    %126 = arith.addf %120, %125 : vector<16x256xf32>
    %c15_i32_71 = arith.constant 15 : i32
    %127 = tpu.dynamic_rotate %111 by %c15_i32_71 dim 0 : vector<16x256xf32>, i32 -> vector<16x256xf32>
    %128 = arith.mulf %127, %3 : vector<16x256xf32>
    %c2_72 = arith.constant 2 : index
    %c2_73 = arith.constant 2 : index
    %129 = memref.load %arg3[%c2_72, %c2_73] : memref<7x4xf32, #tpu.memory_space<smem>>
    %130 = vector.broadcast %129 : f32 to vector<16x256xf32>
    %131 = arith.mulf %128, %130 : vector<16x256xf32>
    %132 = arith.addf %126, %131 : vector<16x256xf32>
    %c16_i32_74 = arith.constant 16 : i32
    %133 = tpu.dynamic_rotate %111 by %c16_i32_74 dim 1 : vector<16x256xf32>, i32 -> vector<16x256xf32>
    %134 = arith.mulf %133, %5 : vector<16x256xf32>
    %c3_75 = arith.constant 3 : index
    %c2_76 = arith.constant 2 : index
    %135 = memref.load %arg3[%c3_75, %c2_76] : memref<7x4xf32, #tpu.memory_space<smem>>
    %136 = vector.broadcast %135 : f32 to vector<16x256xf32>
    %137 = arith.mulf %134, %136 : vector<16x256xf32>
    %138 = arith.addf %132, %137 : vector<16x256xf32>
    %c240_i32_77 = arith.constant 240 : i32
    %139 = tpu.dynamic_rotate %111 by %c240_i32_77 dim 1 : vector<16x256xf32>, i32 -> vector<16x256xf32>
    %140 = arith.mulf %139, %7 : vector<16x256xf32>
    %c4_78 = arith.constant 4 : index
    %c2_79 = arith.constant 2 : index
    %141 = memref.load %arg3[%c4_78, %c2_79] : memref<7x4xf32, #tpu.memory_space<smem>>
    %142 = vector.broadcast %141 : f32 to vector<16x256xf32>
    %143 = arith.mulf %140, %142 : vector<16x256xf32>
    %144 = arith.addf %138, %143 : vector<16x256xf32>
    %c1_i32_80 = arith.constant 1 : i32
    %145 = tpu.dynamic_rotate %111 by %c1_i32_80 dim 1 : vector<16x256xf32>, i32 -> vector<16x256xf32>
    %146 = arith.mulf %145, %9 : vector<16x256xf32>
    %c5_81 = arith.constant 5 : index
    %c2_82 = arith.constant 2 : index
    %147 = memref.load %arg3[%c5_81, %c2_82] : memref<7x4xf32, #tpu.memory_space<smem>>
    %148 = vector.broadcast %147 : f32 to vector<16x256xf32>
    %149 = arith.mulf %146, %148 : vector<16x256xf32>
    %150 = arith.addf %144, %149 : vector<16x256xf32>
    %c255_i32_83 = arith.constant 255 : i32
    %151 = tpu.dynamic_rotate %111 by %c255_i32_83 dim 1 : vector<16x256xf32>, i32 -> vector<16x256xf32>
    %152 = arith.mulf %151, %11 : vector<16x256xf32>
    %c6_84 = arith.constant 6 : index
    %c2_85 = arith.constant 2 : index
    %153 = memref.load %arg3[%c6_84, %c2_85] : memref<7x4xf32, #tpu.memory_space<smem>>
    %154 = vector.broadcast %153 : f32 to vector<16x256xf32>
    %155 = arith.mulf %152, %154 : vector<16x256xf32>
    %156 = arith.addf %150, %155 : vector<16x256xf32>
    %157 = vector.broadcast %117 : vector<1x1xf32> to vector<16x256xf32>
    %158 = arith.addf %156, %157 : vector<16x256xf32>
    %c0_86 = arith.constant 0 : index
    %c3_87 = arith.constant 3 : index
    %c0_88 = arith.constant 0 : index
    %c0_89 = arith.constant 0 : index
    %159 = vector.load %arg1[%c0_86, %c3_87, %c0_88, %c0_89] : memref<1x4x16x256xf32, #tpu.memory_space<vmem>>, vector<1x1x16x256xf32>
    %160 = vector.shape_cast %159 : vector<1x1x16x256xf32> to vector<16x256xf32>
    %cst_90 = arith.constant dense<0.000000e+00> : vector<16xf32>
    %161 = vector.multi_reduction <add>, %160, %cst_90 [1] : vector<16x256xf32> to vector<16xf32>
    %162 = vector.shape_cast %161 : vector<16xf32> to vector<16x1xf32>
    %cst_91 = arith.constant dense<0.000000e+00> : vector<1xf32>
    %163 = vector.multi_reduction <add>, %162, %cst_91 [0] : vector<16x1xf32> to vector<1xf32>
    %164 = vector.shape_cast %163 : vector<1xf32> to vector<1x1xf32>
    %cst_92 = arith.constant 2.44140625E-4 : f32
    %165 = vector.broadcast %cst_92 : f32 to vector<1x1xf32>
    %166 = arith.mulf %164, %165 : vector<1x1xf32>
    %c0_93 = arith.constant 0 : index
    %c3_94 = arith.constant 3 : index
    %167 = memref.load %arg3[%c0_93, %c3_94] : memref<7x4xf32, #tpu.memory_space<smem>>
    %168 = vector.broadcast %167 : f32 to vector<16x256xf32>
    %169 = arith.mulf %160, %168 : vector<16x256xf32>
    %c1_i32_95 = arith.constant 1 : i32
    %170 = tpu.dynamic_rotate %160 by %c1_i32_95 dim 0 : vector<16x256xf32>, i32 -> vector<16x256xf32>
    %171 = arith.mulf %170, %1 : vector<16x256xf32>
    %c1_96 = arith.constant 1 : index
    %c3_97 = arith.constant 3 : index
    %172 = memref.load %arg3[%c1_96, %c3_97] : memref<7x4xf32, #tpu.memory_space<smem>>
    %173 = vector.broadcast %172 : f32 to vector<16x256xf32>
    %174 = arith.mulf %171, %173 : vector<16x256xf32>
    %175 = arith.addf %169, %174 : vector<16x256xf32>
    %c15_i32_98 = arith.constant 15 : i32
    %176 = tpu.dynamic_rotate %160 by %c15_i32_98 dim 0 : vector<16x256xf32>, i32 -> vector<16x256xf32>
    %177 = arith.mulf %176, %3 : vector<16x256xf32>
    %c2_99 = arith.constant 2 : index
    %c3_100 = arith.constant 3 : index
    %178 = memref.load %arg3[%c2_99, %c3_100] : memref<7x4xf32, #tpu.memory_space<smem>>
    %179 = vector.broadcast %178 : f32 to vector<16x256xf32>
    %180 = arith.mulf %177, %179 : vector<16x256xf32>
    %181 = arith.addf %175, %180 : vector<16x256xf32>
    %c16_i32_101 = arith.constant 16 : i32
    %182 = tpu.dynamic_rotate %160 by %c16_i32_101 dim 1 : vector<16x256xf32>, i32 -> vector<16x256xf32>
    %183 = arith.mulf %182, %5 : vector<16x256xf32>
    %c3_102 = arith.constant 3 : index
    %c3_103 = arith.constant 3 : index
    %184 = memref.load %arg3[%c3_102, %c3_103] : memref<7x4xf32, #tpu.memory_space<smem>>
    %185 = vector.broadcast %184 : f32 to vector<16x256xf32>
    %186 = arith.mulf %183, %185 : vector<16x256xf32>
    %187 = arith.addf %181, %186 : vector<16x256xf32>
    %c240_i32_104 = arith.constant 240 : i32
    %188 = tpu.dynamic_rotate %160 by %c240_i32_104 dim 1 : vector<16x256xf32>, i32 -> vector<16x256xf32>
    %189 = arith.mulf %188, %7 : vector<16x256xf32>
    %c4_105 = arith.constant 4 : index
    %c3_106 = arith.constant 3 : index
    %190 = memref.load %arg3[%c4_105, %c3_106] : memref<7x4xf32, #tpu.memory_space<smem>>
    %191 = vector.broadcast %190 : f32 to vector<16x256xf32>
    %192 = arith.mulf %189, %191 : vector<16x256xf32>
    %193 = arith.addf %187, %192 : vector<16x256xf32>
    %c1_i32_107 = arith.constant 1 : i32
    %194 = tpu.dynamic_rotate %160 by %c1_i32_107 dim 1 : vector<16x256xf32>, i32 -> vector<16x256xf32>
    %195 = arith.mulf %194, %9 : vector<16x256xf32>
    %c5_108 = arith.constant 5 : index
    %c3_109 = arith.constant 3 : index
    %196 = memref.load %arg3[%c5_108, %c3_109] : memref<7x4xf32, #tpu.memory_space<smem>>
    %197 = vector.broadcast %196 : f32 to vector<16x256xf32>
    %198 = arith.mulf %195, %197 : vector<16x256xf32>
    %199 = arith.addf %193, %198 : vector<16x256xf32>
    %c255_i32_110 = arith.constant 255 : i32
    %200 = tpu.dynamic_rotate %160 by %c255_i32_110 dim 1 : vector<16x256xf32>, i32 -> vector<16x256xf32>
    %201 = arith.mulf %200, %11 : vector<16x256xf32>
    %c6_111 = arith.constant 6 : index
    %c3_112 = arith.constant 3 : index
    %202 = memref.load %arg3[%c6_111, %c3_112] : memref<7x4xf32, #tpu.memory_space<smem>>
    %203 = vector.broadcast %202 : f32 to vector<16x256xf32>
    %204 = arith.mulf %201, %203 : vector<16x256xf32>
    %205 = arith.addf %199, %204 : vector<16x256xf32>
    %206 = vector.broadcast %166 : vector<1x1xf32> to vector<16x256xf32>
    %207 = arith.addf %205, %206 : vector<16x256xf32>
    %c0_113 = arith.constant 0 : index
    %c0_114 = arith.constant 0 : index
    %208 = memref.load %arg4[%c0_113, %c0_114] : memref<8x4xf32, #tpu.memory_space<smem>>
    %209 = vector.broadcast %208 : f32 to vector<16x256xf32>
    %210 = arith.mulf %60, %209 : vector<16x256xf32>
    %c0_115 = arith.constant 0 : index
    %c1_116 = arith.constant 1 : index
    %211 = memref.load %arg4[%c0_115, %c1_116] : memref<8x4xf32, #tpu.memory_space<smem>>
    %212 = vector.broadcast %211 : f32 to vector<16x256xf32>
    %213 = arith.mulf %109, %212 : vector<16x256xf32>
    %214 = arith.addf %210, %213 : vector<16x256xf32>
    %c0_117 = arith.constant 0 : index
    %c2_118 = arith.constant 2 : index
    %215 = memref.load %arg4[%c0_117, %c2_118] : memref<8x4xf32, #tpu.memory_space<smem>>
    %216 = vector.broadcast %215 : f32 to vector<16x256xf32>
    %217 = arith.mulf %158, %216 : vector<16x256xf32>
    %218 = arith.addf %214, %217 : vector<16x256xf32>
    %c0_119 = arith.constant 0 : index
    %c3_120 = arith.constant 3 : index
    %219 = memref.load %arg4[%c0_119, %c3_120] : memref<8x4xf32, #tpu.memory_space<smem>>
    %220 = vector.broadcast %219 : f32 to vector<16x256xf32>
    %221 = arith.mulf %207, %220 : vector<16x256xf32>
    %222 = arith.addf %218, %221 : vector<16x256xf32>
    %c0_121 = arith.constant 0 : index
    %223 = memref.load %arg5[%c0_121] : memref<8xf32, #tpu.memory_space<smem>>
    %224 = vector.broadcast %223 : f32 to vector<16x256xf32>
    %225 = arith.addf %222, %224 : vector<16x256xf32>
    %cst_122 = arith.constant 4.471500e-02 : f32
    %226 = vector.broadcast %cst_122 : f32 to vector<16x256xf32>
    %227 = arith.mulf %226, %225 : vector<16x256xf32>
    %228 = arith.mulf %227, %225 : vector<16x256xf32>
    %229 = arith.mulf %228, %225 : vector<16x256xf32>
    %230 = arith.addf %225, %229 : vector<16x256xf32>
    %cst_123 = arith.constant 0.797884583 : f32
    %231 = vector.broadcast %cst_123 : f32 to vector<16x256xf32>
    %232 = arith.mulf %231, %230 : vector<16x256xf32>
    %233 = math.tanh %232 : vector<16x256xf32>
    %cst_124 = arith.constant 5.000000e-01 : f32
    %234 = vector.broadcast %cst_124 : f32 to vector<16x256xf32>
    %235 = arith.mulf %234, %225 : vector<16x256xf32>
    %cst_125 = arith.constant 1.000000e+00 : f32
    %236 = vector.broadcast %cst_125 : f32 to vector<16x256xf32>
    %237 = arith.addf %236, %233 : vector<16x256xf32>
    %238 = arith.mulf %235, %237 : vector<16x256xf32>
    %c0_126 = arith.constant 0 : index
    %c0_127 = arith.constant 0 : index
    %c0_128 = arith.constant 0 : index
    %c0_129 = arith.constant 0 : index
    %239 = vector.load %arg6[%c0_126, %c0_127, %c0_128, %c0_129] : memref<1x8x16x256xf32, #tpu.memory_space<vmem>>, vector<1x1x16x256xf32>
    %240 = vector.shape_cast %239 : vector<1x1x16x256xf32> to vector<16x256xf32>
    %241 = vector.shape_cast %238 : vector<16x256xf32> to vector<1x1x16x256xf32>
    tpu.vector_store %arg6[%c0_126, %c0_127, %c0_128, %c0_129], %241 {strides = array<i32>} : memref<1x8x16x256xf32, #tpu.memory_space<vmem>>, vector<1x1x16x256xf32>,
    %c1_130 = arith.constant 1 : index
    %c0_131 = arith.constant 0 : index
    %242 = memref.load %arg4[%c1_130, %c0_131] : memref<8x4xf32, #tpu.memory_space<smem>>
    %243 = vector.broadcast %242 : f32 to vector<16x256xf32>
    %244 = arith.mulf %60, %243 : vector<16x256xf32>
    %c1_132 = arith.constant 1 : index
    %c1_133 = arith.constant 1 : index
    %245 = memref.load %arg4[%c1_132, %c1_133] : memref<8x4xf32, #tpu.memory_space<smem>>
    %246 = vector.broadcast %245 : f32 to vector<16x256xf32>
    %247 = arith.mulf %109, %246 : vector<16x256xf32>
    %248 = arith.addf %244, %247 : vector<16x256xf32>
    %c1_134 = arith.constant 1 : index
    %c2_135 = arith.constant 2 : index
    %249 = memref.load %arg4[%c1_134, %c2_135] : memref<8x4xf32, #tpu.memory_space<smem>>
    %250 = vector.broadcast %249 : f32 to vector<16x256xf32>
    %251 = arith.mulf %158, %250 : vector<16x256xf32>
    %252 = arith.addf %248, %251 : vector<16x256xf32>
    %c1_136 = arith.constant 1 : index
    %c3_137 = arith.constant 3 : index
    %253 = memref.load %arg4[%c1_136, %c3_137] : memref<8x4xf32, #tpu.memory_space<smem>>
    %254 = vector.broadcast %253 : f32 to vector<16x256xf32>
    %255 = arith.mulf %207, %254 : vector<16x256xf32>
    %256 = arith.addf %252, %255 : vector<16x256xf32>
    %c1_138 = arith.constant 1 : index
    %257 = memref.load %arg5[%c1_138] : memref<8xf32, #tpu.memory_space<smem>>
    %258 = vector.broadcast %257 : f32 to vector<16x256xf32>
    %259 = arith.addf %256, %258 : vector<16x256xf32>
    %cst_139 = arith.constant 4.471500e-02 : f32
    %260 = vector.broadcast %cst_139 : f32 to vector<16x256xf32>
    %261 = arith.mulf %260, %259 : vector<16x256xf32>
    %262 = arith.mulf %261, %259 : vector<16x256xf32>
    %263 = arith.mulf %262, %259 : vector<16x256xf32>
    %264 = arith.addf %259, %263 : vector<16x256xf32>
    %cst_140 = arith.constant 0.797884583 : f32
    %265 = vector.broadcast %cst_140 : f32 to vector<16x256xf32>
    %266 = arith.mulf %265, %264 : vector<16x256xf32>
    %267 = math.tanh %266 : vector<16x256xf32>
    %cst_141 = arith.constant 5.000000e-01 : f32
    %268 = vector.broadcast %cst_141 : f32 to vector<16x256xf32>
    %269 = arith.mulf %268, %259 : vector<16x256xf32>
    %cst_142 = arith.constant 1.000000e+00 : f32
    %270 = vector.broadcast %cst_142 : f32 to vector<16x256xf32>
    %271 = arith.addf %270, %267 : vector<16x256xf32>
    %272 = arith.mulf %269, %271 : vector<16x256xf32>
    %c0_143 = arith.constant 0 : index
    %c1_144 = arith.constant 1 : index
    %c0_145 = arith.constant 0 : index
    %c0_146 = arith.constant 0 : index
    %273 = vector.load %arg6[%c0_143, %c1_144, %c0_145, %c0_146] : memref<1x8x16x256xf32, #tpu.memory_space<vmem>>, vector<1x1x16x256xf32>
    %274 = vector.shape_cast %273 : vector<1x1x16x256xf32> to vector<16x256xf32>
    %275 = vector.shape_cast %272 : vector<16x256xf32> to vector<1x1x16x256xf32>
    tpu.vector_store %arg6[%c0_143, %c1_144, %c0_145, %c0_146], %275 {strides = array<i32>} : memref<1x8x16x256xf32, #tpu.memory_space<vmem>>, vector<1x1x16x256xf32>,
    %c2_147 = arith.constant 2 : index
    %c0_148 = arith.constant 0 : index
    %276 = memref.load %arg4[%c2_147, %c0_148] : memref<8x4xf32, #tpu.memory_space<smem>>
    %277 = vector.broadcast %276 : f32 to vector<16x256xf32>
    %278 = arith.mulf %60, %277 : vector<16x256xf32>
    %c2_149 = arith.constant 2 : index
    %c1_150 = arith.constant 1 : index
    %279 = memref.load %arg4[%c2_149, %c1_150] : memref<8x4xf32, #tpu.memory_space<smem>>
    %280 = vector.broadcast %279 : f32 to vector<16x256xf32>
    %281 = arith.mulf %109, %280 : vector<16x256xf32>
    %282 = arith.addf %278, %281 : vector<16x256xf32>
    %c2_151 = arith.constant 2 : index
    %c2_152 = arith.constant 2 : index
    %283 = memref.load %arg4[%c2_151, %c2_152] : memref<8x4xf32, #tpu.memory_space<smem>>
    %284 = vector.broadcast %283 : f32 to vector<16x256xf32>
    %285 = arith.mulf %158, %284 : vector<16x256xf32>
    %286 = arith.addf %282, %285 : vector<16x256xf32>
    %c2_153 = arith.constant 2 : index
    %c3_154 = arith.constant 3 : index
    %287 = memref.load %arg4[%c2_153, %c3_154] : memref<8x4xf32, #tpu.memory_space<smem>>
    %288 = vector.broadcast %287 : f32 to vector<16x256xf32>
    %289 = arith.mulf %207, %288 : vector<16x256xf32>
    %290 = arith.addf %286, %289 : vector<16x256xf32>
    %c2_155 = arith.constant 2 : index
    %291 = memref.load %arg5[%c2_155] : memref<8xf32, #tpu.memory_space<smem>>
    %292 = vector.broadcast %291 : f32 to vector<16x256xf32>
    %293 = arith.addf %290, %292 : vector<16x256xf32>
    %cst_156 = arith.constant 4.471500e-02 : f32
    %294 = vector.broadcast %cst_156 : f32 to vector<16x256xf32>
    %295 = arith.mulf %294, %293 : vector<16x256xf32>
    %296 = arith.mulf %295, %293 : vector<16x256xf32>
    %297 = arith.mulf %296, %293 : vector<16x256xf32>
    %298 = arith.addf %293, %297 : vector<16x256xf32>
    %cst_157 = arith.constant 0.797884583 : f32
    %299 = vector.broadcast %cst_157 : f32 to vector<16x256xf32>
    %300 = arith.mulf %299, %298 : vector<16x256xf32>
    %301 = math.tanh %300 : vector<16x256xf32>
    %cst_158 = arith.constant 5.000000e-01 : f32
    %302 = vector.broadcast %cst_158 : f32 to vector<16x256xf32>
    %303 = arith.mulf %302, %293 : vector<16x256xf32>
    %cst_159 = arith.constant 1.000000e+00 : f32
    %304 = vector.broadcast %cst_159 : f32 to vector<16x256xf32>
    %305 = arith.addf %304, %301 : vector<16x256xf32>
    %306 = arith.mulf %303, %305 : vector<16x256xf32>
    %c0_160 = arith.constant 0 : index
    %c2_161 = arith.constant 2 : index
    %c0_162 = arith.constant 0 : index
    %c0_163 = arith.constant 0 : index
    %307 = vector.load %arg6[%c0_160, %c2_161, %c0_162, %c0_163] : memref<1x8x16x256xf32, #tpu.memory_space<vmem>>, vector<1x1x16x256xf32>
    %308 = vector.shape_cast %307 : vector<1x1x16x256xf32> to vector<16x256xf32>
    %309 = vector.shape_cast %306 : vector<16x256xf32> to vector<1x1x16x256xf32>
    tpu.vector_store %arg6[%c0_160, %c2_161, %c0_162, %c0_163], %309 {strides = array<i32>} : memref<1x8x16x256xf32, #tpu.memory_space<vmem>>, vector<1x1x16x256xf32>,
    %c3_164 = arith.constant 3 : index
    %c0_165 = arith.constant 0 : index
    %310 = memref.load %arg4[%c3_164, %c0_165] : memref<8x4xf32, #tpu.memory_space<smem>>
    %311 = vector.broadcast %310 : f32 to vector<16x256xf32>
    %312 = arith.mulf %60, %311 : vector<16x256xf32>
    %c3_166 = arith.constant 3 : index
    %c1_167 = arith.constant 1 : index
    %313 = memref.load %arg4[%c3_166, %c1_167] : memref<8x4xf32, #tpu.memory_space<smem>>
    %314 = vector.broadcast %313 : f32 to vector<16x256xf32>
    %315 = arith.mulf %109, %314 : vector<16x256xf32>
    %316 = arith.addf %312, %315 : vector<16x256xf32>
    %c3_168 = arith.constant 3 : index
    %c2_169 = arith.constant 2 : index
    %317 = memref.load %arg4[%c3_168, %c2_169] : memref<8x4xf32, #tpu.memory_space<smem>>
    %318 = vector.broadcast %317 : f32 to vector<16x256xf32>
    %319 = arith.mulf %158, %318 : vector<16x256xf32>
    %320 = arith.addf %316, %319 : vector<16x256xf32>
    %c3_170 = arith.constant 3 : index
    %c3_171 = arith.constant 3 : index
    %321 = memref.load %arg4[%c3_170, %c3_171] : memref<8x4xf32, #tpu.memory_space<smem>>
    %322 = vector.broadcast %321 : f32 to vector<16x256xf32>
    %323 = arith.mulf %207, %322 : vector<16x256xf32>
    %324 = arith.addf %320, %323 : vector<16x256xf32>
    %c3_172 = arith.constant 3 : index
    %325 = memref.load %arg5[%c3_172] : memref<8xf32, #tpu.memory_space<smem>>
    %326 = vector.broadcast %325 : f32 to vector<16x256xf32>
    %327 = arith.addf %324, %326 : vector<16x256xf32>
    %cst_173 = arith.constant 4.471500e-02 : f32
    %328 = vector.broadcast %cst_173 : f32 to vector<16x256xf32>
    %329 = arith.mulf %328, %327 : vector<16x256xf32>
    %330 = arith.mulf %329, %327 : vector<16x256xf32>
    %331 = arith.mulf %330, %327 : vector<16x256xf32>
    %332 = arith.addf %327, %331 : vector<16x256xf32>
    %cst_174 = arith.constant 0.797884583 : f32
    %333 = vector.broadcast %cst_174 : f32 to vector<16x256xf32>
    %334 = arith.mulf %333, %332 : vector<16x256xf32>
    %335 = math.tanh %334 : vector<16x256xf32>
    %cst_175 = arith.constant 5.000000e-01 : f32
    %336 = vector.broadcast %cst_175 : f32 to vector<16x256xf32>
    %337 = arith.mulf %336, %327 : vector<16x256xf32>
    %cst_176 = arith.constant 1.000000e+00 : f32
    %338 = vector.broadcast %cst_176 : f32 to vector<16x256xf32>
    %339 = arith.addf %338, %335 : vector<16x256xf32>
    %340 = arith.mulf %337, %339 : vector<16x256xf32>
    %c0_177 = arith.constant 0 : index
    %c3_178 = arith.constant 3 : index
    %c0_179 = arith.constant 0 : index
    %c0_180 = arith.constant 0 : index
    %341 = vector.load %arg6[%c0_177, %c3_178, %c0_179, %c0_180] : memref<1x8x16x256xf32, #tpu.memory_space<vmem>>, vector<1x1x16x256xf32>
    %342 = vector.shape_cast %341 : vector<1x1x16x256xf32> to vector<16x256xf32>
    %343 = vector.shape_cast %340 : vector<16x256xf32> to vector<1x1x16x256xf32>
    tpu.vector_store %arg6[%c0_177, %c3_178, %c0_179, %c0_180], %343 {strides = array<i32>} : memref<1x8x16x256xf32, #tpu.memory_space<vmem>>, vector<1x1x16x256xf32>,
    %c4_181 = arith.constant 4 : index
    %c0_182 = arith.constant 0 : index
    %344 = memref.load %arg4[%c4_181, %c0_182] : memref<8x4xf32, #tpu.memory_space<smem>>
    %345 = vector.broadcast %344 : f32 to vector<16x256xf32>
    %346 = arith.mulf %60, %345 : vector<16x256xf32>
    %c4_183 = arith.constant 4 : index
    %c1_184 = arith.constant 1 : index
    %347 = memref.load %arg4[%c4_183, %c1_184] : memref<8x4xf32, #tpu.memory_space<smem>>
    %348 = vector.broadcast %347 : f32 to vector<16x256xf32>
    %349 = arith.mulf %109, %348 : vector<16x256xf32>
    %350 = arith.addf %346, %349 : vector<16x256xf32>
    %c4_185 = arith.constant 4 : index
    %c2_186 = arith.constant 2 : index
    %351 = memref.load %arg4[%c4_185, %c2_186] : memref<8x4xf32, #tpu.memory_space<smem>>
    %352 = vector.broadcast %351 : f32 to vector<16x256xf32>
    %353 = arith.mulf %158, %352 : vector<16x256xf32>
    %354 = arith.addf %350, %353 : vector<16x256xf32>
    %c4_187 = arith.constant 4 : index
    %c3_188 = arith.constant 3 : index
    %355 = memref.load %arg4[%c4_187, %c3_188] : memref<8x4xf32, #tpu.memory_space<smem>>
    %356 = vector.broadcast %355 : f32 to vector<16x256xf32>
    %357 = arith.mulf %207, %356 : vector<16x256xf32>
    %358 = arith.addf %354, %357 : vector<16x256xf32>
    %c4_189 = arith.constant 4 : index
    %359 = memref.load %arg5[%c4_189] : memref<8xf32, #tpu.memory_space<smem>>
    %360 = vector.broadcast %359 : f32 to vector<16x256xf32>
    %361 = arith.addf %358, %360 : vector<16x256xf32>
    %cst_190 = arith.constant 4.471500e-02 : f32
    %362 = vector.broadcast %cst_190 : f32 to vector<16x256xf32>
    %363 = arith.mulf %362, %361 : vector<16x256xf32>
    %364 = arith.mulf %363, %361 : vector<16x256xf32>
    %365 = arith.mulf %364, %361 : vector<16x256xf32>
    %366 = arith.addf %361, %365 : vector<16x256xf32>
    %cst_191 = arith.constant 0.797884583 : f32
    %367 = vector.broadcast %cst_191 : f32 to vector<16x256xf32>
    %368 = arith.mulf %367, %366 : vector<16x256xf32>
    %369 = math.tanh %368 : vector<16x256xf32>
    %cst_192 = arith.constant 5.000000e-01 : f32
    %370 = vector.broadcast %cst_192 : f32 to vector<16x256xf32>
    %371 = arith.mulf %370, %361 : vector<16x256xf32>
    %cst_193 = arith.constant 1.000000e+00 : f32
    %372 = vector.broadcast %cst_193 : f32 to vector<16x256xf32>
    %373 = arith.addf %372, %369 : vector<16x256xf32>
    %374 = arith.mulf %371, %373 : vector<16x256xf32>
    %c0_194 = arith.constant 0 : index
    %c4_195 = arith.constant 4 : index
    %c0_196 = arith.constant 0 : index
    %c0_197 = arith.constant 0 : index
    %375 = vector.load %arg6[%c0_194, %c4_195, %c0_196, %c0_197] : memref<1x8x16x256xf32, #tpu.memory_space<vmem>>, vector<1x1x16x256xf32>
    %376 = vector.shape_cast %375 : vector<1x1x16x256xf32> to vector<16x256xf32>
    %377 = vector.shape_cast %374 : vector<16x256xf32> to vector<1x1x16x256xf32>
    tpu.vector_store %arg6[%c0_194, %c4_195, %c0_196, %c0_197], %377 {strides = array<i32>} : memref<1x8x16x256xf32, #tpu.memory_space<vmem>>, vector<1x1x16x256xf32>,
    %c5_198 = arith.constant 5 : index
    %c0_199 = arith.constant 0 : index
    %378 = memref.load %arg4[%c5_198, %c0_199] : memref<8x4xf32, #tpu.memory_space<smem>>
    %379 = vector.broadcast %378 : f32 to vector<16x256xf32>
    %380 = arith.mulf %60, %379 : vector<16x256xf32>
    %c5_200 = arith.constant 5 : index
    %c1_201 = arith.constant 1 : index
    %381 = memref.load %arg4[%c5_200, %c1_201] : memref<8x4xf32, #tpu.memory_space<smem>>
    %382 = vector.broadcast %381 : f32 to vector<16x256xf32>
    %383 = arith.mulf %109, %382 : vector<16x256xf32>
    %384 = arith.addf %380, %383 : vector<16x256xf32>
    %c5_202 = arith.constant 5 : index
    %c2_203 = arith.constant 2 : index
    %385 = memref.load %arg4[%c5_202, %c2_203] : memref<8x4xf32, #tpu.memory_space<smem>>
    %386 = vector.broadcast %385 : f32 to vector<16x256xf32>
    %387 = arith.mulf %158, %386 : vector<16x256xf32>
    %388 = arith.addf %384, %387 : vector<16x256xf32>
    %c5_204 = arith.constant 5 : index
    %c3_205 = arith.constant 3 : index
    %389 = memref.load %arg4[%c5_204, %c3_205] : memref<8x4xf32, #tpu.memory_space<smem>>
    %390 = vector.broadcast %389 : f32 to vector<16x256xf32>
    %391 = arith.mulf %207, %390 : vector<16x256xf32>
    %392 = arith.addf %388, %391 : vector<16x256xf32>
    %c5_206 = arith.constant 5 : index
    %393 = memref.load %arg5[%c5_206] : memref<8xf32, #tpu.memory_space<smem>>
    %394 = vector.broadcast %393 : f32 to vector<16x256xf32>
    %395 = arith.addf %392, %394 : vector<16x256xf32>
    %cst_207 = arith.constant 4.471500e-02 : f32
    %396 = vector.broadcast %cst_207 : f32 to vector<16x256xf32>
    %397 = arith.mulf %396, %395 : vector<16x256xf32>
    %398 = arith.mulf %397, %395 : vector<16x256xf32>
    %399 = arith.mulf %398, %395 : vector<16x256xf32>
    %400 = arith.addf %395, %399 : vector<16x256xf32>
    %cst_208 = arith.constant 0.797884583 : f32
    %401 = vector.broadcast %cst_208 : f32 to vector<16x256xf32>
    %402 = arith.mulf %401, %400 : vector<16x256xf32>
    %403 = math.tanh %402 : vector<16x256xf32>
    %cst_209 = arith.constant 5.000000e-01 : f32
    %404 = vector.broadcast %cst_209 : f32 to vector<16x256xf32>
    %405 = arith.mulf %404, %395 : vector<16x256xf32>
    %cst_210 = arith.constant 1.000000e+00 : f32
    %406 = vector.broadcast %cst_210 : f32 to vector<16x256xf32>
    %407 = arith.addf %406, %403 : vector<16x256xf32>
    %408 = arith.mulf %405, %407 : vector<16x256xf32>
    %c0_211 = arith.constant 0 : index
    %c5_212 = arith.constant 5 : index
    %c0_213 = arith.constant 0 : index
    %c0_214 = arith.constant 0 : index
    %409 = vector.load %arg6[%c0_211, %c5_212, %c0_213, %c0_214] : memref<1x8x16x256xf32, #tpu.memory_space<vmem>>, vector<1x1x16x256xf32>
    %410 = vector.shape_cast %409 : vector<1x1x16x256xf32> to vector<16x256xf32>
    %411 = vector.shape_cast %408 : vector<16x256xf32> to vector<1x1x16x256xf32>
    tpu.vector_store %arg6[%c0_211, %c5_212, %c0_213, %c0_214], %411 {strides = array<i32>} : memref<1x8x16x256xf32, #tpu.memory_space<vmem>>, vector<1x1x16x256xf32>,
    %c6_215 = arith.constant 6 : index
    %c0_216 = arith.constant 0 : index
    %412 = memref.load %arg4[%c6_215, %c0_216] : memref<8x4xf32, #tpu.memory_space<smem>>
    %413 = vector.broadcast %412 : f32 to vector<16x256xf32>
    %414 = arith.mulf %60, %413 : vector<16x256xf32>
    %c6_217 = arith.constant 6 : index
    %c1_218 = arith.constant 1 : index
    %415 = memref.load %arg4[%c6_217, %c1_218] : memref<8x4xf32, #tpu.memory_space<smem>>
    %416 = vector.broadcast %415 : f32 to vector<16x256xf32>
    %417 = arith.mulf %109, %416 : vector<16x256xf32>
    %418 = arith.addf %414, %417 : vector<16x256xf32>
    %c6_219 = arith.constant 6 : index
    %c2_220 = arith.constant 2 : index
    %419 = memref.load %arg4[%c6_219, %c2_220] : memref<8x4xf32, #tpu.memory_space<smem>>
    %420 = vector.broadcast %419 : f32 to vector<16x256xf32>
    %421 = arith.mulf %158, %420 : vector<16x256xf32>
    %422 = arith.addf %418, %421 : vector<16x256xf32>
    %c6_221 = arith.constant 6 : index
    %c3_222 = arith.constant 3 : index
    %423 = memref.load %arg4[%c6_221, %c3_222] : memref<8x4xf32, #tpu.memory_space<smem>>
    %424 = vector.broadcast %423 : f32 to vector<16x256xf32>
    %425 = arith.mulf %207, %424 : vector<16x256xf32>
    %426 = arith.addf %422, %425 : vector<16x256xf32>
    %c6_223 = arith.constant 6 : index
    %427 = memref.load %arg5[%c6_223] : memref<8xf32, #tpu.memory_space<smem>>
    %428 = vector.broadcast %427 : f32 to vector<16x256xf32>
    %429 = arith.addf %426, %428 : vector<16x256xf32>
    %cst_224 = arith.constant 4.471500e-02 : f32
    %430 = vector.broadcast %cst_224 : f32 to vector<16x256xf32>
    %431 = arith.mulf %430, %429 : vector<16x256xf32>
    %432 = arith.mulf %431, %429 : vector<16x256xf32>
    %433 = arith.mulf %432, %429 : vector<16x256xf32>
    %434 = arith.addf %429, %433 : vector<16x256xf32>
    %cst_225 = arith.constant 0.797884583 : f32
    %435 = vector.broadcast %cst_225 : f32 to vector<16x256xf32>
    %436 = arith.mulf %435, %434 : vector<16x256xf32>
    %437 = math.tanh %436 : vector<16x256xf32>
    %cst_226 = arith.constant 5.000000e-01 : f32
    %438 = vector.broadcast %cst_226 : f32 to vector<16x256xf32>
    %439 = arith.mulf %438, %429 : vector<16x256xf32>
    %cst_227 = arith.constant 1.000000e+00 : f32
    %440 = vector.broadcast %cst_227 : f32 to vector<16x256xf32>
    %441 = arith.addf %440, %437 : vector<16x256xf32>
    %442 = arith.mulf %439, %441 : vector<16x256xf32>
    %c0_228 = arith.constant 0 : index
    %c6_229 = arith.constant 6 : index
    %c0_230 = arith.constant 0 : index
    %c0_231 = arith.constant 0 : index
    %443 = vector.load %arg6[%c0_228, %c6_229, %c0_230, %c0_231] : memref<1x8x16x256xf32, #tpu.memory_space<vmem>>, vector<1x1x16x256xf32>
    %444 = vector.shape_cast %443 : vector<1x1x16x256xf32> to vector<16x256xf32>
    %445 = vector.shape_cast %442 : vector<16x256xf32> to vector<1x1x16x256xf32>
    tpu.vector_store %arg6[%c0_228, %c6_229, %c0_230, %c0_231], %445 {strides = array<i32>} : memref<1x8x16x256xf32, #tpu.memory_space<vmem>>, vector<1x1x16x256xf32>,
    %c7 = arith.constant 7 : index
    %c0_232 = arith.constant 0 : index
    %446 = memref.load %arg4[%c7, %c0_232] : memref<8x4xf32, #tpu.memory_space<smem>>
    %447 = vector.broadcast %446 : f32 to vector<16x256xf32>
    %448 = arith.mulf %60, %447 : vector<16x256xf32>
    %c7_233 = arith.constant 7 : index
    %c1_234 = arith.constant 1 : index
    %449 = memref.load %arg4[%c7_233, %c1_234] : memref<8x4xf32, #tpu.memory_space<smem>>
    %450 = vector.broadcast %449 : f32 to vector<16x256xf32>
    %451 = arith.mulf %109, %450 : vector<16x256xf32>
    %452 = arith.addf %448, %451 : vector<16x256xf32>
    %c7_235 = arith.constant 7 : index
    %c2_236 = arith.constant 2 : index
    %453 = memref.load %arg4[%c7_235, %c2_236] : memref<8x4xf32, #tpu.memory_space<smem>>
    %454 = vector.broadcast %453 : f32 to vector<16x256xf32>
    %455 = arith.mulf %158, %454 : vector<16x256xf32>
    %456 = arith.addf %452, %455 : vector<16x256xf32>
    %c7_237 = arith.constant 7 : index
    %c3_238 = arith.constant 3 : index
    %457 = memref.load %arg4[%c7_237, %c3_238] : memref<8x4xf32, #tpu.memory_space<smem>>
    %458 = vector.broadcast %457 : f32 to vector<16x256xf32>
    %459 = arith.mulf %207, %458 : vector<16x256xf32>
    %460 = arith.addf %456, %459 : vector<16x256xf32>
    %c7_239 = arith.constant 7 : index
    %461 = memref.load %arg5[%c7_239] : memref<8xf32, #tpu.memory_space<smem>>
    %462 = vector.broadcast %461 : f32 to vector<16x256xf32>
    %463 = arith.addf %460, %462 : vector<16x256xf32>
    %cst_240 = arith.constant 4.471500e-02 : f32
    %464 = vector.broadcast %cst_240 : f32 to vector<16x256xf32>
    %465 = arith.mulf %464, %463 : vector<16x256xf32>
    %466 = arith.mulf %465, %463 : vector<16x256xf32>
    %467 = arith.mulf %466, %463 : vector<16x256xf32>
    %468 = arith.addf %463, %467 : vector<16x256xf32>
    %cst_241 = arith.constant 0.797884583 : f32
    %469 = vector.broadcast %cst_241 : f32 to vector<16x256xf32>
    %470 = arith.mulf %469, %468 : vector<16x256xf32>
    %471 = math.tanh %470 : vector<16x256xf32>
    %cst_242 = arith.constant 5.000000e-01 : f32
    %472 = vector.broadcast %cst_242 : f32 to vector<16x256xf32>
    %473 = arith.mulf %472, %463 : vector<16x256xf32>
    %cst_243 = arith.constant 1.000000e+00 : f32
    %474 = vector.broadcast %cst_243 : f32 to vector<16x256xf32>
    %475 = arith.addf %474, %471 : vector<16x256xf32>
    %476 = arith.mulf %473, %475 : vector<16x256xf32>
    %c0_244 = arith.constant 0 : index
    %c7_245 = arith.constant 7 : index
    %c0_246 = arith.constant 0 : index
    %c0_247 = arith.constant 0 : index
    %477 = vector.load %arg6[%c0_244, %c7_245, %c0_246, %c0_247] : memref<1x8x16x256xf32, #tpu.memory_space<vmem>>, vector<1x1x16x256xf32>
    %478 = vector.shape_cast %477 : vector<1x1x16x256xf32> to vector<16x256xf32>
    %479 = vector.shape_cast %476 : vector<16x256xf32> to vector<1x1x16x256xf32>
    tpu.vector_store %arg6[%c0_244, %c7_245, %c0_246, %c0_247], %479 {strides = array<i32>} : memref<1x8x16x256xf32, #tpu.memory_space<vmem>>, vector<1x1x16x256xf32>,
    return
  }
  func.func @transform_0(%arg0: i32) -> (i32, i32, i32, i32) {
    %c0_i32 = arith.constant 0 : i32
    %c0_i32_0 = arith.constant 0 : i32
    %c0_i32_1 = arith.constant 0 : i32
    %c0_i32_2 = arith.constant 0 : i32
    return %arg0, %c0_i32, %c0_i32_0, %c0_i32_1 : i32, i32, i32, i32
  }
  func.func @transform_1(%arg0: i32) -> (i32, i32, i32) {
    %c0_i32 = arith.constant 0 : i32
    %c0_i32_0 = arith.constant 0 : i32
    %c0_i32_1 = arith.constant 0 : i32
    %c0_i32_2 = arith.constant 0 : i32
    return %c0_i32, %c0_i32_0, %c0_i32_1 : i32, i32, i32
  }
  func.func @transform_2(%arg0: i32) -> (i32, i32) {
    %c0_i32 = arith.constant 0 : i32
    %c0_i32_0 = arith.constant 0 : i32
    %c0_i32_1 = arith.constant 0 : i32
    return %c0_i32, %c0_i32_0 : i32, i32
  }
  func.func @transform_3(%arg0: i32) -> (i32, i32) {
    %c0_i32 = arith.constant 0 : i32
    %c0_i32_0 = arith.constant 0 : i32
    %c0_i32_1 = arith.constant 0 : i32
    return %c0_i32, %c0_i32_0 : i32, i32
  }
  func.func @transform_4(%arg0: i32) -> i32 {
    %c0_i32 = arith.constant 0 : i32
    %c0_i32_0 = arith.constant 0 : i32
    return %c0_i32 : i32
  }
  func.func @transform_5(%arg0: i32) -> (i32, i32, i32, i32) {
    %c0_i32 = arith.constant 0 : i32
    %c0_i32_0 = arith.constant 0 : i32
    %c0_i32_1 = arith.constant 0 : i32
    %c0_i32_2 = arith.constant 0 : i32
    return %arg0, %c0_i32, %c0_i32_0, %c0_i32_1 : i32, i32, i32, i32
  }
}

</mosaic_0001>

<llo_original>
// kernel: tpu_custom_call.1
$region0: #{tpu_custom_call.1}
  #allocation0 [shape = 'u32[]', space=smem, size = 0x4, offset = 0x4, fixed_abs, tag = 'smem constant byte address 0x4 - core index']
  #allocation1 [shape = 'u32[144,128]{1,0:T(1,128)}', space=vmem, size = 0x12000, scoped, tag = 'internal scratch']
  %s0 = inlined_call_operand.hbm [shape: f32[2,4,16,256], index: 0, kind: input, shape index: {}]
  %s1 = inlined_call_operand.hbm [shape: f32[6,16,256], index: 1, kind: input, shape index: {}]
  %s2 = inlined_call_operand.vmem [shape: f32[7,4], index: 2, kind: input, shape index: {}]
  %s3 = inlined_call_operand.vmem [shape: f32[8,4], index: 3, kind: input, shape index: {}]
  %s4 = inlined_call_operand.vmem [shape: f32[8], index: 4, kind: input, shape index: {}]
  %s5 = inlined_call_operand.hbm [shape: f32[2,8,16,256], index: 5, kind: output, shape index: {}]
  %s6 = sld [smem:[#allocation0]]
  $region73: #{tpu_custom_call.1} parent=0
    _
  %s8 = ssub.s32 1, %s6
  %s9 = scalar_select 0, %s8, %s6
  $region1: #{tpu_custom_call.1} parent=0
    #allocation2 [shape = 'u8[131072]{0}', space=vmem, size = 0x20000, scoped, tag = 'input window, operand 0']
    #allocation3 [shape = 's32[2]{0}', space=sflag, size = 0x8, scoped, tag = 'scoped memory for tpu_custom_call.1']
    #allocation4 [shape = 's32[2]{0}', space=sflag, size = 0x8, scoped, tag = 'scoped memory for tpu_custom_call.1']
    #allocation5 [shape = 's32[2]{0}', space=sflag, size = 0x8, scoped, tag = 'scoped memory for tpu_custom_call.1']
    #allocation6 [shape = 'u8[98304]{0}', space=vmem, size = 0x18000, scoped, tag = 'input window, operand 1, single buffered']
    #allocation7 [shape = 's32[1]{0}', space=sflag, size = 0x4, scoped, tag = 'scoped memory for tpu_custom_call.1']
    #allocation8 [shape = 'u8[4096]{0}', space=smem, size = 0x1000, scoped, tag = 'input window, operand 2, single buffered']
    #allocation9 [shape = 'u8[4096]{0}', space=smem, size = 0x1000, scoped, tag = 'input window, operand 3, single buffered']
    #allocation10 [shape = 's32[1]{0}', space=sflag, size = 0x4, scoped, tag = 'scoped memory for tpu_custom_call.1']
    #allocation11 [shape = 'u8[512]{0}', space=smem, size = 0x200, scoped, tag = 'input window, operand 4, single buffered']
    #allocation12 [shape = 'u8[262144]{0}', space=vmem, size = 0x40000, scoped, tag = 'output window, operand 0']
    %10 = vsyncpa [#allocation3], 0
    %s11 = scalar_lea.sflag [#allocation3], 1
    %12 = vsyncpa %s11, 0
    %13 = vsyncpa [#allocation7], 0
    %14 = vsyncpa [#allocation5], 0
    %15 = vsyncpa [#allocation10], 0
    %16 = vsyncpa [#allocation4], 0
    %s17 = scalar_lea.sflag [#allocation4], 1
    %18 = vsyncpa %s17, 0
    loop: start=0, step=1, limit=4
    $region2: #{tpu_custom_call.1} parent=1 // loop_pre_header
      _
    $region3: #{tpu_custom_call.1} parent=1 // loop_header
      %s20 = sphi 0, %s24
      %p21 = scmp.ge.s32.totalorder %s20, 4
      %s30 = sphi 0, %s32
      %s33 = sphi 0, %s30
      %s34 = sphi 0, %s33
      %s50 = sphi 0, %s34
      %s54 = sphi 0, %s54
      %s56 = sphi 0, %s54
      %s57 = sphi 0, %s56
      %s71 = sphi 0, %s57
      %s75 = sphi 0, %s75
      %s77 = sphi 0, %s75
      %s78 = sphi 0, %s77
      %s92 = sphi 0, %s78
      %s96 = sphi 0, %s96
      %s98 = sphi 0, %s96
      %s99 = sphi 0, %s98
      %s113 = sphi 0, %s99
      %s117 = sphi 0, %s117
      %s119 = sphi 0, %s117
      %s120 = sphi 0, %s119
      %s134 = sphi 0, %s120
      %s140 = sphi 0, %s142
      %s143 = sphi 0, %s140
      %s144 = sphi 0, %s143
      %s160 = sphi 0, %s144
    $region4: #{tpu_custom_call.1} parent=1 // loop_header_branch
      %23 = sbr.rel (%p21) target = $region8
    $region5: #{tpu_custom_call.1} parent=1 // loop_body
      %s25 = ssub.s32 %s20, 1
      %s26 = ssub.s32 %s20, 2
      %s27 = sadd.s32 %s20, 1
      %s28 = ssub.s32 %s20, %s27
      %p29 = scmp.eq.s32.totalorder %s28, 0
      %s31 = sadd.s32 %s30, 1
      %s32 = scalar_select %p29, %s30, %s31
      %p35 = pneg %p29
      %p36 = scmp.eq.s32.totalorder %s20, 1
      %p37 = por %p35, %p36
      %p38 = scmp.ne.s32.totalorder %s30, %s33
      %p39 = scmp.eq.s32.totalorder %s20, 0
      %p40 = por %p38, %p39
      %p41 = scmp.ne.s32.totalorder %s30, %s33
      %p42 = scmp.eq.s32.totalorder %s25, 1
      %p43 = por %p41, %p42
      %p44 = scmp.ne.s32.totalorder %s33, %s34
      %p45 = scmp.eq.s32.totalorder %s25, 0
      %p46 = por %p44, %p45
      %p47 = scmp.ne.s32.totalorder %s33, %s34
      %p48 = scmp.eq.s32.totalorder %s26, 1
      %p49 = por %p47, %p48
      %p51 = scmp.ne.s32.totalorder %s34, %s50
      %p52 = scmp.eq.s32.totalorder %s26, 0
      %p53 = por %p51, %p52
      %s55 = sadd.s32 %s54, 1
      %p58 = scmp.eq.s32.totalorder %s20, 1
      %p59 = scmp.ne.s32.totalorder %s54, %s56
      %p60 = scmp.eq.s32.totalorder %s20, 0
      %p61 = por %p59, %p60
      %p62 = scmp.ne.s32.totalorder %s54, %s56
      %p63 = scmp.eq.s32.totalorder %s25, 1
      %p64 = por %p62, %p63
      %p65 = scmp.ne.s32.totalorder %s56, %s57
      %p66 = scmp.eq.s32.totalorder %s25, 0
      %p67 = por %p65, %p66
      %p68 = scmp.ne.s32.totalorder %s56, %s57
      %p69 = scmp.eq.s32.totalorder %s26, 1
      %p70 = por %p68, %p69
      %p72 = scmp.ne.s32.totalorder %s57, %s71
      %p73 = scmp.eq.s32.totalorder %s26, 0
      %p74 = por %p72, %p73
      %s76 = sadd.s32 %s75, 1
      %p79 = scmp.eq.s32.totalorder %s20, 1
      %p80 = scmp.ne.s32.totalorder %s75, %s77
      %p81 = scmp.eq.s32.totalorder %s20, 0
      %p82 = por %p80, %p81
      %p83 = scmp.ne.s32.totalorder %s75, %s77
      %p84 = scmp.eq.s32.totalorder %s25, 1
      %p85 = por %p83, %p84
      %p86 = scmp.ne.s32.totalorder %s77, %s78
      %p87 = scmp.eq.s32.totalorder %s25, 0
      %p88 = por %p86, %p87
      %p89 = scmp.ne.s32.totalorder %s77, %s78
      %p90 = scmp.eq.s32.totalorder %s26, 1
      %p91 = por %p89, %p90
      %p93 = scmp.ne.s32.totalorder %s78, %s92
      %p94 = scmp.eq.s32.totalorder %s26, 0
      %p95 = por %p93, %p94
      %s97 = sadd.s32 %s96, 1
      %p100 = scmp.eq.s32.totalorder %s20, 1
      %p101 = scmp.ne.s32.totalorder %s96, %s98
      %p102 = scmp.eq.s32.totalorder %s20, 0
      %p103 = por %p101, %p102
      %p104 = scmp.ne.s32.totalorder %s96, %s98
      %p105 = scmp.eq.s32.totalorder %s25, 1
      %p106 = por %p104, %p105
      %p107 = scmp.ne.s32.totalorder %s98, %s99
      %p108 = scmp.eq.s32.totalorder %s25, 0
      %p109 = por %p107, %p108
      %p110 = scmp.ne.s32.totalorder %s98, %s99
      %p111 = scmp.eq.s32.totalorder %s26, 1
      %p112 = por %p110, %p111
      %p114 = scmp.ne.s32.totalorder %s99, %s113
      %p115 = scmp.eq.s32.totalorder %s26, 0
      %p116 = por %p114, %p115
      %s118 = sadd.s32 %s117, 1
      %p121 = scmp.eq.s32.totalorder %s20, 1
      %p122 = scmp.ne.s32.totalorder %s117, %s119
      %p123 = scmp.eq.s32.totalorder %s20, 0
      %p124 = por %p122, %p123
      %p125 = scmp.ne.s32.totalorder %s117, %s119
      %p126 = scmp.eq.s32.totalorder %s25, 1
      %p127 = por %p125, %p126
      %p128 = scmp.ne.s32.totalorder %s119, %s120
      %p129 = scmp.eq.s32.totalorder %s25, 0
      %p130 = por %p128, %p129
      %p131 = scmp.ne.s32.totalorder %s119, %s120
      %p132 = scmp.eq.s32.totalorder %s26, 1
      %p133 = por %p131, %p132
      %p135 = scmp.ne.s32.totalorder %s120, %s134
      %p136 = scmp.eq.s32.totalorder %s26, 0
      %p137 = por %p135, %p136
      %s138 = ssub.s32 %s20, %s27
      %p139 = scmp.eq.s32.totalorder %s138, 0
      %s141 = sadd.s32 %s140, 1
      %s142 = scalar_select %p139, %s140, %s141
      %p145 = pneg %p139
      %p146 = scmp.eq.s32.totalorder %s20, 1
      %p147 = por %p145, %p146
      %p148 = scmp.ne.s32.totalorder %s140, %s143
      %p149 = scmp.eq.s32.totalorder %s20, 0
      %p150 = por %p148, %p149
      %p151 = scmp.ne.s32.totalorder %s140, %s143
      %p152 = scmp.eq.s32.totalorder %s25, 1
      %p153 = por %p151, %p152
      %p154 = scmp.ne.s32.totalorder %s143, %s144
      %p155 = scmp.eq.s32.totalorder %s25, 0
      %p156 = por %p154, %p155
      %p157 = scmp.ne.s32.totalorder %s143, %s144
      %p158 = scmp.eq.s32.totalorder %s26, 1
      %p159 = por %p157, %p158
      %p161 = scmp.ne.s32.totalorder %s144, %s160
      %p162 = scmp.eq.s32.totalorder %s26, 0
      %p163 = por %p161, %p162
      %p164 = scmp.le.s32.totalorder 1, %s20
      %p165 = scmp.lt.s32.totalorder %s20, 3
      %p166 = pnand %p164, %p165
      %p167 = pneg %p166
      // Predicated region
      $region9: #{tpu_custom_call.1} parent=5 // pred_check
        _
      $region10: #{tpu_custom_call.1} parent=5 // pred_check_branch
        %169 = sbr.rel (%p166) target = $region12
      $region11: #{tpu_custom_call.1} parent=5 // pred_region
        %s170 = ssub.s32 %s20, 1
        // Predicated region
        $region13: #{tpu_custom_call.1} parent=11 // pred_check
          %p171 = pneg %p67
        $region14: #{tpu_custom_call.1} parent=11 // pred_check_branch
          %173 = sbr.rel (%p171) target = $region16
        $region15: #{tpu_custom_call.1} parent=11 // pred_region
          %s175 = ssub.s32 3072, 3072
          %176 = vsyncadd [#allocation7], %s175
          %s177 = sshll.u32 [#allocation6], 4
          %s178 = int_to_ptr.vmem [resolvable:$true] %s177
          %183 = dma.hbm_to_vmem [thread:$0]  %s1, 3072, %s178, [#allocation7], 256, 256, 16
        $region16: #{tpu_custom_call.1} parent=11 // pred_fallthru
          _
        // Predicated region
        $region17: #{tpu_custom_call.1} parent=11 // pred_check
          %p184 = pneg %p88
        $region18: #{tpu_custom_call.1} parent=11 // pred_check_branch
          %186 = sbr.rel (%p184) target = $region20
        $region19: #{tpu_custom_call.1} parent=11 // pred_region
          %s188 = ssub.s32 128, 128
          %189 = vsyncadd [#allocation5], %s188
          %s191 = sshll.u32 %s2, 4
          %s192 = int_to_ptr.vmem [resolvable:$true] %s191
          %194 = dma.vmem_to_smem %s192, 128, [#allocation8], [#allocation5]
        $region20: #{tpu_custom_call.1} parent=11 // pred_fallthru
          _
        // Predicated region
        $region21: #{tpu_custom_call.1} parent=11 // pred_check
          %p195 = pneg %p109
        $region22: #{tpu_custom_call.1} parent=11 // pred_check_branch
          %197 = sbr.rel (%p195) target = $region24
        $region23: #{tpu_custom_call.1} parent=11 // pred_region
          %s199 = ssub.s32 128, 128
          %200 = vsyncadd [#allocation10], %s199
          %s202 = sshll.u32 %s3, 4
          %s203 = int_to_ptr.vmem [resolvable:$true] %s202
          %205 = dma.vmem_to_smem %s203, 128, [#allocation9], [#allocation10]
        $region24: #{tpu_custom_call.1} parent=11 // pred_fallthru
          _
        // Predicated region
        $region25: #{tpu_custom_call.1} parent=11 // pred_check
          %p206 = pneg %p130
        $region26: #{tpu_custom_call.1} parent=11 // pred_check_branch
          %208 = sbr.rel (%p206) target = $region28
        $region27: #{tpu_custom_call.1} parent=11 // pred_region
          %s210 = ssub.s32 16, 16
          %211 = vsyncadd [#allocation10], %s210
          %s213 = sshll.u32 %s4, 4
          %s214 = int_to_ptr.vmem [resolvable:$true] %s213
          %216 = dma.vmem_to_smem %s214, 16, [#allocation11], [#allocation10]
        $region28: #{tpu_custom_call.1} parent=11 // pred_fallthru
          _
      $region12: #{tpu_custom_call.1} parent=5 // pred_fallthru
        _
      %p217 = scmp.lt.s32.totalorder %s20, 2
      // Predicated region
      $region29: #{tpu_custom_call.1} parent=5 // pred_check
        %p218 = pneg %p217
      $region30: #{tpu_custom_call.1} parent=5 // pred_check_branch
        %220 = sbr.rel (%p218) target = $region32
      $region31: #{tpu_custom_call.1} parent=5 // pred_region
        // Predicated region
        $region33: #{tpu_custom_call.1} parent=31 // pred_check
          %p221 = pneg %p40
        $region34: #{tpu_custom_call.1} parent=31 // pred_check_branch
          %223 = sbr.rel (%p221) target = $region36
        $region35: #{tpu_custom_call.1} parent=31 // pred_region
          %s224 = sand.u32 %s30, 1
          %s225 = scalar_lea.sflag [#allocation3], %s224
          %s226 = sand.u32 %s30, 1
          %s227 = smul.addr %s226, 128
          %s228 = scalar_lea.vmem [#allocation2], %s227
          %s230 = ssub.s32 2048, 2048
          %231 = vsyncadd %s225, %s230
          %s232 = smul.addr %s20, 16
          %s233 = smul.addr %s232, 128
          %s234 = scalar_lea.hbm %s0, %s233
          %s235 = sshll.u32 %s228, 4
          %s236 = int_to_ptr.vmem [resolvable:$true] %s235
          %241 = dma.hbm_to_vmem [thread:$0]  %s234, 2048, %s236, %s225, 256, 256, 16
        $region36: #{tpu_custom_call.1} parent=31 // pred_fallthru
          _
      $region32: #{tpu_custom_call.1} parent=5 // pred_fallthru
        _
      %p242 = scmp.le.s32.totalorder 1, %s20
      %p243 = scmp.lt.s32.totalorder %s20, 3
      %p244 = pnand %p242, %p243
      %p245 = pneg %p244
      // Predicated region
      $region37: #{tpu_custom_call.1} parent=5 // pred_check
        _
      $region38: #{tpu_custom_call.1} parent=5 // pred_check_branch
        %247 = sbr.rel (%p244) target = $region40
      $region39: #{tpu_custom_call.1} parent=5 // pred_region
        %s248 = ssub.s32 %s20, 1
        %s249 = sand.u32 %s33, 1
        %s250 = scalar_lea.sflag [#allocation3], %s249
        %s251 = sand.u32 %s33, 1
        %s252 = smul.addr %s251, 128
        %s253 = scalar_lea.vmem [#allocation2], %s252
        // Predicated region
        $region41: #{tpu_custom_call.1} parent=39 // pred_check
          %p254 = pneg %p46
        $region42: #{tpu_custom_call.1} parent=39 // pred_check_branch
          %256 = sbr.rel (%p254) target = $region44
        $region43: #{tpu_custom_call.1} parent=39 // pred_region
          %257 = dma.done %s250, 2048
        $region44: #{tpu_custom_call.1} parent=39 // pred_fallthru
          _
        // Predicated region
        $region45: #{tpu_custom_call.1} parent=39 // pred_check
          %p258 = pneg %p67
        $region46: #{tpu_custom_call.1} parent=39 // pred_check_branch
          %260 = sbr.rel (%p258) target = $region48
        $region47: #{tpu_custom_call.1} parent=39 // pred_region
          %261 = dma.done [#allocation7], 3072
        $region48: #{tpu_custom_call.1} parent=39 // pred_fallthru
          _
        // Predicated region
        $region49: #{tpu_custom_call.1} parent=39 // pred_check
          %p262 = pneg %p88
        $region50: #{tpu_custom_call.1} parent=39 // pred_check_branch
          %264 = sbr.rel (%p262) target = $region52
        $region51: #{tpu_custom_call.1} parent=39 // pred_region
          %265 = dma.done [#allocation5], 128
        $region52: #{tpu_custom_call.1} parent=39 // pred_fallthru
          _
        // Predicated region
        $region53: #{tpu_custom_call.1} parent=39 // pred_check
          %p266 = pneg %p109
        $region54: #{tpu_custom_call.1} parent=39 // pred_check_branch
          %268 = sbr.rel (%p266) target = $region56
        $region55: #{tpu_custom_call.1} parent=39 // pred_region
          %269 = dma.done [#allocation10], 128
        $region56: #{tpu_custom_call.1} parent=39 // pred_fallthru
          _
        // Predicated region
        $region57: #{tpu_custom_call.1} parent=39 // pred_check
          %p270 = pneg %p130
        $region58: #{tpu_custom_call.1} parent=39 // pred_check_branch
          %272 = sbr.rel (%p270) target = $region60
        $region59: #{tpu_custom_call.1} parent=39 // pred_region
          %273 = dma.done [#allocation10], 16
        $region60: #{tpu_custom_call.1} parent=39 // pred_fallthru
          _
        %274 = sfence
        %s275 = sand.u32 %s33, 1
        %s276 = scalar_lea.sflag [#allocation3], %s275
        %s277 = sand.u32 %s33, 1
        %s278 = smul.addr %s277, 128
        %s279 = scalar_lea.vmem [#allocation2], %s278
        %p280 = pneg %p46
        %p281 = pneg %p43
        %p282 = pneg %p67
        %p283 = pneg %p64
        %p284 = pneg %p88
        %p285 = pneg %p85
        %p286 = pneg %p109
        %p287 = pneg %p106
        %p288 = pneg %p130
        %p289 = pneg %p127
        %p290 = pneg %p156
        %p291 = pneg %p153
        %s292 = sand.u32 %s143, 1
        %s293 = scalar_lea.sflag [#allocation4], %s292
        %s294 = sand.u32 %s143, 1
        %s295 = smul.addr %s294, 256
        %s296 = scalar_lea.vmem [#allocation12], %s295
        %v297 = vld [vmem:[#allocation6] sm:$0xff]
        %v298 = vld [vmem:[#allocation6 + $0x8] sm:$0xff]
        %v299 = vld [vmem:[#allocation6 + $0x10] sm:$0xff]
        %v300 = vld [vmem:[#allocation6 + $0x18] sm:$0xff]
        %s301 = scalar_lea.vmem [#allocation6], 32
        %v302 = vld [vmem:[%s301] sm:$0xff]
        %v303 = vld [vmem:[%s301 + $0x8] sm:$0xff]
        %v304 = vld [vmem:[%s301 + $0x10] sm:$0xff]
        %v305 = vld [vmem:[%s301 + $0x18] sm:$0xff]
        %s306 = scalar_lea.vmem [#allocation6], 64
        %v307 = vld [vmem:[%s306] sm:$0xff]
        %v308 = vld [vmem:[%s306 + $0x8] sm:$0xff]
        %v309 = vld [vmem:[%s306 + $0x10] sm:$0xff]
        %v310 = vld [vmem:[%s306 + $0x18] sm:$0xff]
        %s311 = scalar_lea.vmem [#allocation6], 96
        %v312 = vld [vmem:[%s311] sm:$0xff]
        %v313 = vld [vmem:[%s311 + $0x8] sm:$0xff]
        %v314 = vld [vmem:[%s311 + $0x10] sm:$0xff]
        %v315 = vld [vmem:[%s311 + $0x18] sm:$0xff]
        %s316 = scalar_lea.vmem [#allocation6], 128
        %v317 = vld [vmem:[%s316] sm:$0xff]
        %v318 = vld [vmem:[%s316 + $0x8] sm:$0xff]
        %v319 = vld [vmem:[%s316 + $0x10] sm:$0xff]
        %v320 = vld [vmem:[%s316 + $0x18] sm:$0xff]
        %s321 = scalar_lea.vmem [#allocation6], 160
        %v322 = vld [vmem:[%s321] sm:$0xff]
        %v323 = vld [vmem:[%s321 + $0x8] sm:$0xff]
        %v324 = vld [vmem:[%s321 + $0x10] sm:$0xff]
        %v325 = vld [vmem:[%s321 + $0x18] sm:$0xff]
        %v326 = vld [vmem:[%s253] sm:$0xff]
        %v327 = vld [vmem:[%s253 + $0x8] sm:$0xff]
        %v328 = vld [vmem:[%s253 + $0x10] sm:$0xff]
        %v329 = vld [vmem:[%s253 + $0x18] sm:$0xff]
        %v330 = vadd.f32 %v326, %v327
        %331 = vadd.xlane.f32.xlu0 %v330
        %v332 = vpop.xlane.xlu0 %331
        %v333 = vadd.f32 %v328, %v329
        %334 = vadd.xlane.f32.xlu0 %v333
        %v335 = vpop.xlane.xlu0 %334
        %v336 = vadd.f32 %v332, %v335
        %v337 = vrot.slane %v336, 4
        %v338 = vadd.f32 %v336, %v337
        %v339 = vrot.slane %v338, 2
        %v340 = vadd.f32 %v338, %v339
        %v341 = vrot.slane %v340, 1
        %v342 = vadd.f32 %v340, %v341
        %v343 = vmul.f32 %v342, 0.00024414063
        %s344 = sld [smem:[#allocation8]]
        %v345 = vstv %s344
        %v346 = vmul.f32 %v326, %v345
        %v347 = vmul.f32 %v327, %v345
        %v348 = vmul.f32 %v328, %v345
        %v349 = vmul.f32 %v329, %v345
        %v350 = vrot.slane %v326, 7
        %v351 = vrot.slane %v327, 7
        %v352 = vrot.slane %v328, 7
        %v353 = vrot.slane %v329, 7
        %v354 = vlaneseq
        %v355 = vshrl.u32 %v354, 7
        %vm356 = vcmp.lt.s32.totalorder %v355, 1
        %v357 = vsel %vm356, %v350, %v352
        %v358 = vsel %vm356, %v351, %v353
        %v359 = vsel %vm356, %v352, %v350
        %v360 = vsel %vm356, %v353, %v351
        %v361 = vmul.f32 %v359, %v297
        %v362 = vmul.f32 %v360, %v298
        %v363 = vmul.f32 %v357, %v299
        %v364 = vmul.f32 %v358, %v300
        %s365 = sld [smem:[#allocation8 + $0x80]]
        %v366 = vstv %s365
        %v367 = vmul.f32 %v361, %v366
        %v368 = vmul.f32 %v362, %v366
        %v369 = vmul.f32 %v363, %v366
        %v370 = vmul.f32 %v364, %v366
        %v371 = vadd.f32 %v346, %v367
        %v372 = vadd.f32 %v347, %v368
        %v373 = vadd.f32 %v348, %v369
        %v374 = vadd.f32 %v349, %v370
        %v375 = vrot.slane %v326, 1
        %v376 = vrot.slane %v327, 1
        %v377 = vrot.slane %v328, 1
        %v378 = vrot.slane %v329, 1
        %vm379 = vcmp.lt.s32.totalorder %v355, 7
        %v380 = vsel %vm379, %v375, %v377
        %v381 = vsel %vm379, %v376, %v378
        %v382 = vsel %vm379, %v377, %v375
        %v383 = vsel %vm379, %v378, %v376
        %v384 = vmul.f32 %v380, %v302
        %v385 = vmul.f32 %v381, %v303
        %v386 = vmul.f32 %v382, %v304
        %v387 = vmul.f32 %v383, %v305
        %s388 = sld [smem:[#allocation8 + $0x100]]
        %v389 = vstv %s388
        %v390 = vmul.f32 %v384, %v389
        %v391 = vmul.f32 %v385, %v389
        %v392 = vmul.f32 %v386, %v389
        %v393 = vmul.f32 %v387, %v389
        %v394 = vadd.f32 %v371, %v390
        %v395 = vadd.f32 %v372, %v391
        %v396 = vadd.f32 %v373, %v392
        %v397 = vadd.f32 %v374, %v393
        %398 = vrot.lane.b32.xlu0 %v326, 16
        %v399 = vpop.permute.xlu0 %398
        %400 = vrot.lane.b32.xlu0 %v328, 16
        %v401 = vpop.permute.xlu0 %400
        %402 = vrot.lane.b32.xlu0 %v327, 16
        %v403 = vpop.permute.xlu0 %402
        %404 = vrot.lane.b32.xlu0 %v329, 16
        %v405 = vpop.permute.xlu0 %404
        %v406 = vlaneseq
        %v407 = vand.u32 %v406, 127
        %vm408 = vcmp.lt.s32.totalorder %v407, 16
        %v409 = vsel %vm408, %v399, %v403
        %v410 = vsel %vm408, %v401, %v405
        %v411 = vsel %vm408, %v403, %v399
        %v412 = vsel %vm408, %v405, %v401
        %v413 = vmul.f32 %v411, %v307
        %v414 = vmul.f32 %v409, %v308
        %v415 = vmul.f32 %v412, %v309
        %v416 = vmul.f32 %v410, %v310
        %s417 = sld [smem:[#allocation8 + $0x180]]
        %v418 = vstv %s417
        %v419 = vmul.f32 %v413, %v418
        %v420 = vmul.f32 %v414, %v418
        %v421 = vmul.f32 %v415, %v418
        %v422 = vmul.f32 %v416, %v418
        %v423 = vadd.f32 %v394, %v419
        %v424 = vadd.f32 %v395, %v420
        %v425 = vadd.f32 %v396, %v421
        %v426 = vadd.f32 %v397, %v422
        %427 = vrot.lane.b32.xlu0 %v326, 112
        %v428 = vpop.permute.xlu0 %427
        %429 = vrot.lane.b32.xlu0 %v328, 112
        %v430 = vpop.permute.xlu0 %429
        %431 = vrot.lane.b32.xlu0 %v327, 112
        %v432 = vpop.permute.xlu0 %431
        %433 = vrot.lane.b32.xlu0 %v329, 112
        %v434 = vpop.permute.xlu0 %433
        %vm435 = vcmp.lt.s32.totalorder %v407, 112
        %v436 = vsel %vm435, %v428, %v432
        %v437 = vsel %vm435, %v430, %v434
        %v438 = vsel %vm435, %v432, %v428
        %v439 = vsel %vm435, %v434, %v430
        %v440 = vmul.f32 %v436, %v312
        %v441 = vmul.f32 %v438, %v313
        %v442 = vmul.f32 %v437, %v314
        %v443 = vmul.f32 %v439, %v315
        %s444 = sld [smem:[#allocation8 + $0x200]]
        %v445 = vstv %s444
        %v446 = vmul.f32 %v440, %v445
        %v447 = vmul.f32 %v441, %v445
        %v448 = vmul.f32 %v442, %v445
        %v449 = vmul.f32 %v443, %v445
        %v450 = vadd.f32 %v423, %v446
        %v451 = vadd.f32 %v424, %v447
        %v452 = vadd.f32 %v425, %v448
        %v453 = vadd.f32 %v426, %v449
        %454 = vrot.lane.b32.xlu0 %v326, 1
        %v455 = vpop.permute.xlu0 %454
        %456 = vrot.lane.b32.xlu0 %v328, 1
        %v457 = vpop.permute.xlu0 %456
        %458 = vrot.lane.b32.xlu0 %v327, 1
        %v459 = vpop.permute.xlu0 %458
        %460 = vrot.lane.b32.xlu0 %v329, 1
        %v461 = vpop.permute.xlu0 %460
        %vm462 = vcmp.lt.s32.totalorder %v407, 1
        %v463 = vsel %vm462, %v455, %v459
        %v464 = vsel %vm462, %v457, %v461
        %v465 = vsel %vm462, %v459, %v455
        %v466 = vsel %vm462, %v461, %v457
        %v467 = vmul.f32 %v465, %v317
        %v468 = vmul.f32 %v463, %v318
        %v469 = vmul.f32 %v466, %v319
        %v470 = vmul.f32 %v464, %v320
        %s471 = sld [smem:[#allocation8 + $0x280]]
        %v472 = vstv %s471
        %v473 = vmul.f32 %v467, %v472
        %v474 = vmul.f32 %v468, %v472
        %v475 = vmul.f32 %v469, %v472
        %v476 = vmul.f32 %v470, %v472
        %v477 = vadd.f32 %v450, %v473
        %v478 = vadd.f32 %v451, %v474
        %v479 = vadd.f32 %v452, %v475
        %v480 = vadd.f32 %v453, %v476
        %481 = vrot.lane.b32.xlu0 %v326, 127
        %v482 = vpop.permute.xlu0 %481
        %483 = vrot.lane.b32.xlu0 %v328, 127
        %v484 = vpop.permute.xlu0 %483
        %485 = vrot.lane.b32.xlu0 %v327, 127
        %v486 = vpop.permute.xlu0 %485
        %487 = vrot.lane.b32.xlu0 %v329, 127
        %v488 = vpop.permute.xlu0 %487
        %vm489 = vcmp.lt.s32.totalorder %v407, 127
        %v490 = vsel %vm489, %v482, %v486
        %v491 = vsel %vm489, %v484, %v488
        %v492 = vsel %vm489, %v486, %v482
        %v493 = vsel %vm489, %v488, %v484
        %v494 = vmul.f32 %v490, %v322
        %v495 = vmul.f32 %v492, %v323
        %v496 = vmul.f32 %v491, %v324
        %v497 = vmul.f32 %v493, %v325
        %s498 = sld [smem:[#allocation8 + $0x300]]
        %v499 = vstv %s498
        %v500 = vmul.f32 %v494, %v499
        %v501 = vmul.f32 %v495, %v499
        %v502 = vmul.f32 %v496, %v499
        %v503 = vmul.f32 %v497, %v499
        %v504 = vadd.f32 %v477, %v500
        %v505 = vadd.f32 %v478, %v501
        %v506 = vadd.f32 %v479, %v502
        %v507 = vadd.f32 %v480, %v503
        %v508 = vadd.f32 %v504, %v343
        %v509 = vadd.f32 %v505, %v343
        %v510 = vadd.f32 %v506, %v343
        %v511 = vadd.f32 %v507, %v343
        %s512 = scalar_lea.vmem %s253, 32 [#allocation2]
        %v513 = vld [vmem:[%s512] sm:$0xff]
        %v514 = vld [vmem:[%s512 + $0x8] sm:$0xff]
        %v515 = vld [vmem:[%s512 + $0x10] sm:$0xff]
        %v516 = vld [vmem:[%s512 + $0x18] sm:$0xff]
        %v517 = vadd.f32 %v513, %v514
        %518 = vadd.xlane.f32.xlu0 %v517
        %v519 = vpop.xlane.xlu0 %518
        %v520 = vadd.f32 %v515, %v516
        %521 = vadd.xlane.f32.xlu0 %v520
        %v522 = vpop.xlane.xlu0 %521
        %v523 = vadd.f32 %v519, %v522
        %v524 = vrot.slane %v523, 4
        %v525 = vadd.f32 %v523, %v524
        %v526 = vrot.slane %v525, 2
        %v527 = vadd.f32 %v525, %v526
        %v528 = vrot.slane %v527, 1
        %v529 = vadd.f32 %v527, %v528
        %v530 = vmul.f32 %v529, 0.00024414063
        %s531 = sld [smem:[#allocation8 + $0x1]]
        %v532 = vstv %s531
        %v533 = vmul.f32 %v513, %v532
        %v534 = vmul.f32 %v514, %v532
        %v535 = vmul.f32 %v515, %v532
        %v536 = vmul.f32 %v516, %v532
        %v537 = vrot.slane %v513, 7
        %v538 = vrot.slane %v514, 7
        %v539 = vrot.slane %v515, 7
        %v540 = vrot.slane %v516, 7
        %v541 = vsel %vm356, %v537, %v539
        %v542 = vsel %vm356, %v538, %v540
        %v543 = vsel %vm356, %v539, %v537
        %v544 = vsel %vm356, %v540, %v538
        %v545 = vmul.f32 %v543, %v297
        %v546 = vmul.f32 %v544, %v298
        %v547 = vmul.f32 %v541, %v299
        %v548 = vmul.f32 %v542, %v300
        %s549 = sld [smem:[#allocation8 + $0x81]]
        %v550 = vstv %s549
        %v551 = vmul.f32 %v545, %v550
        %v552 = vmul.f32 %v546, %v550
        %v553 = vmul.f32 %v547, %v550
        %v554 = vmul.f32 %v548, %v550
        %v555 = vadd.f32 %v533, %v551
        %v556 = vadd.f32 %v534, %v552
        %v557 = vadd.f32 %v535, %v553
        %v558 = vadd.f32 %v536, %v554
        %v559 = vrot.slane %v513, 1
        %v560 = vrot.slane %v514, 1
        %v561 = vrot.slane %v515, 1
        %v562 = vrot.slane %v516, 1
        %v563 = vsel %vm379, %v559, %v561
        %v564 = vsel %vm379, %v560, %v562
        %v565 = vsel %vm379, %v561, %v559
        %v566 = vsel %vm379, %v562, %v560
        %v567 = vmul.f32 %v563, %v302
        %v568 = vmul.f32 %v564, %v303
        %v569 = vmul.f32 %v565, %v304
        %v570 = vmul.f32 %v566, %v305
        %s571 = sld [smem:[#allocation8 + $0x101]]
        %v572 = vstv %s571
        %v573 = vmul.f32 %v567, %v572
        %v574 = vmul.f32 %v568, %v572
        %v575 = vmul.f32 %v569, %v572
        %v576 = vmul.f32 %v570, %v572
        %v577 = vadd.f32 %v555, %v573
        %v578 = vadd.f32 %v556, %v574
        %v579 = vadd.f32 %v557, %v575
        %v580 = vadd.f32 %v558, %v576
        %581 = vrot.lane.b32.xlu0 %v513, 16
        %v582 = vpop.permute.xlu0 %581
        %583 = vrot.lane.b32.xlu0 %v515, 16
        %v584 = vpop.permute.xlu0 %583
        %585 = vrot.lane.b32.xlu0 %v514, 16
        %v586 = vpop.permute.xlu0 %585
        %587 = vrot.lane.b32.xlu0 %v516, 16
        %v588 = vpop.permute.xlu0 %587
        %v589 = vsel %vm408, %v582, %v586
        %v590 = vsel %vm408, %v584, %v588
        %v591 = vsel %vm408, %v586, %v582
        %v592 = vsel %vm408, %v588, %v584
        %v593 = vmul.f32 %v591, %v307
        %v594 = vmul.f32 %v589, %v308
        %v595 = vmul.f32 %v592, %v309
        %v596 = vmul.f32 %v590, %v310
        %s597 = sld [smem:[#allocation8 + $0x181]]
        %v598 = vstv %s597
        %v599 = vmul.f32 %v593, %v598
        %v600 = vmul.f32 %v594, %v598
        %v601 = vmul.f32 %v595, %v598
        %v602 = vmul.f32 %v596, %v598
        %v603 = vadd.f32 %v577, %v599
        %v604 = vadd.f32 %v578, %v600
        %v605 = vadd.f32 %v579, %v601
        %v606 = vadd.f32 %v580, %v602
        %607 = vrot.lane.b32.xlu0 %v513, 112
        %v608 = vpop.permute.xlu0 %607
        %609 = vrot.lane.b32.xlu0 %v515, 112
        %v610 = vpop.permute.xlu0 %609
        %611 = vrot.lane.b32.xlu0 %v514, 112
        %v612 = vpop.permute.xlu0 %611
        %613 = vrot.lane.b32.xlu0 %v516, 112
        %v614 = vpop.permute.xlu0 %613
        %v615 = vsel %vm435, %v608, %v612
        %v616 = vsel %vm435, %v610, %v614
        %v617 = vsel %vm435, %v612, %v608
        %v618 = vsel %vm435, %v614, %v610
        %v619 = vmul.f32 %v615, %v312
        %v620 = vmul.f32 %v617, %v313
        %v621 = vmul.f32 %v616, %v314
        %v622 = vmul.f32 %v618, %v315
        %s623 = sld [smem:[#allocation8 + $0x201]]
        %v624 = vstv %s623
        %v625 = vmul.f32 %v619, %v624
        %v626 = vmul.f32 %v620, %v624
        %v627 = vmul.f32 %v621, %v624
        %v628 = vmul.f32 %v622, %v624
        %v629 = vadd.f32 %v603, %v625
        %v630 = vadd.f32 %v604, %v626
        %v631 = vadd.f32 %v605, %v627
        %v632 = vadd.f32 %v606, %v628
        %633 = vrot.lane.b32.xlu0 %v513, 1
        %v634 = vpop.permute.xlu0 %633
        %635 = vrot.lane.b32.xlu0 %v515, 1
        %v636 = vpop.permute.xlu0 %635
        %637 = vrot.lane.b32.xlu0 %v514, 1
        %v638 = vpop.permute.xlu0 %637
        %639 = vrot.lane.b32.xlu0 %v516, 1
        %v640 = vpop.permute.xlu0 %639
        %v641 = vsel %vm462, %v634, %v638
        %v642 = vsel %vm462, %v636, %v640
        %v643 = vsel %vm462, %v638, %v634
        %v644 = vsel %vm462, %v640, %v636
        %v645 = vmul.f32 %v643, %v317
        %v646 = vmul.f32 %v641, %v318
        %v647 = vmul.f32 %v644, %v319
        %v648 = vmul.f32 %v642, %v320
        %s649 = sld [smem:[#allocation8 + $0x281]]
        %v650 = vstv %s649
        %v651 = vmul.f32 %v645, %v650
        %v652 = vmul.f32 %v646, %v650
        %v653 = vmul.f32 %v647, %v650
        %v654 = vmul.f32 %v648, %v650
        %v655 = vadd.f32 %v629, %v651
        %v656 = vadd.f32 %v630, %v652
        %v657 = vadd.f32 %v631, %v653
        %v658 = vadd.f32 %v632, %v654
        %659 = vrot.lane.b32.xlu0 %v513, 127
        %v660 = vpop.permute.xlu0 %659
        %661 = vrot.lane.b32.xlu0 %v515, 127
        %v662 = vpop.permute.xlu0 %661
        %663 = vrot.lane.b32.xlu0 %v514, 127
        %v664 = vpop.permute.xlu0 %663
        %665 = vrot.lane.b32.xlu0 %v516, 127
        %v666 = vpop.permute.xlu0 %665
        %v667 = vsel %vm489, %v660, %v664
        %v668 = vsel %vm489, %v662, %v666
        %v669 = vsel %vm489, %v664, %v660
        %v670 = vsel %vm489, %v666, %v662
        %v671 = vmul.f32 %v667, %v322
        %v672 = vmul.f32 %v669, %v323
        %v673 = vmul.f32 %v668, %v324
        %v674 = vmul.f32 %v670, %v325
        %s675 = sld [smem:[#allocation8 + $0x301]]
        %v676 = vstv %s675
        %v677 = vmul.f32 %v671, %v676
        %v678 = vmul.f32 %v672, %v676
        %v679 = vmul.f32 %v673, %v676
        %v680 = vmul.f32 %v674, %v676
        %v681 = vadd.f32 %v655, %v677
        %v682 = vadd.f32 %v656, %v678
        %v683 = vadd.f32 %v657, %v679
        %v684 = vadd.f32 %v658, %v680
        %v685 = vadd.f32 %v681, %v530
        %v686 = vadd.f32 %v682, %v530
        %v687 = vadd.f32 %v683, %v530
        %v688 = vadd.f32 %v684, %v530
        %s689 = scalar_lea.vmem %s253, 64 [#allocation2]
        %v690 = vld [vmem:[%s689] sm:$0xff]
        %v691 = vld [vmem:[%s689 + $0x8] sm:$0xff]
        %v692 = vld [vmem:[%s689 + $0x10] sm:$0xff]
        %v693 = vld [vmem:[%s689 + $0x18] sm:$0xff]
        %v694 = vadd.f32 %v690, %v691
        %695 = vadd.xlane.f32.xlu0 %v694
        %v696 = vpop.xlane.xlu0 %695
        %v697 = vadd.f32 %v692, %v693
        %698 = vadd.xlane.f32.xlu0 %v697
        %v699 = vpop.xlane.xlu0 %698
        %v700 = vadd.f32 %v696, %v699
        %v701 = vrot.slane %v700, 4
        %v702 = vadd.f32 %v700, %v701
        %v703 = vrot.slane %v702, 2
        %v704 = vadd.f32 %v702, %v703
        %v705 = vrot.slane %v704, 1
        %v706 = vadd.f32 %v704, %v705
        %v707 = vmul.f32 %v706, 0.00024414063
        %s708 = sld [smem:[#allocation8 + $0x2]]
        %v709 = vstv %s708
        %v710 = vmul.f32 %v690, %v709
        %v711 = vmul.f32 %v691, %v709
        %v712 = vmul.f32 %v692, %v709
        %v713 = vmul.f32 %v693, %v709
        %v714 = vrot.slane %v690, 7
        %v715 = vrot.slane %v691, 7
        %v716 = vrot.slane %v692, 7
        %v717 = vrot.slane %v693, 7
        %v718 = vsel %vm356, %v714, %v716
        %v719 = vsel %vm356, %v715, %v717
        %v720 = vsel %vm356, %v716, %v714
        %v721 = vsel %vm356, %v717, %v715
        %v722 = vmul.f32 %v720, %v297
        %v723 = vmul.f32 %v721, %v298
        %v724 = vmul.f32 %v718, %v299
        %v725 = vmul.f32 %v719, %v300
        %s726 = sld [smem:[#allocation8 + $0x82]]
        %v727 = vstv %s726
        %v728 = vmul.f32 %v722, %v727
        %v729 = vmul.f32 %v723, %v727
        %v730 = vmul.f32 %v724, %v727
        %v731 = vmul.f32 %v725, %v727
        %v732 = vadd.f32 %v710, %v728
        %v733 = vadd.f32 %v711, %v729
        %v734 = vadd.f32 %v712, %v730
        %v735 = vadd.f32 %v713, %v731
        %v736 = vrot.slane %v690, 1
        %v737 = vrot.slane %v691, 1
        %v738 = vrot.slane %v692, 1
        %v739 = vrot.slane %v693, 1
        %v740 = vsel %vm379, %v736, %v738
        %v741 = vsel %vm379, %v737, %v739
        %v742 = vsel %vm379, %v738, %v736
        %v743 = vsel %vm379, %v739, %v737
        %v744 = vmul.f32 %v740, %v302
        %v745 = vmul.f32 %v741, %v303
        %v746 = vmul.f32 %v742, %v304
        %v747 = vmul.f32 %v743, %v305
        %s748 = sld [smem:[#allocation8 + $0x102]]
        %v749 = vstv %s748
        %v750 = vmul.f32 %v744, %v749
        %v751 = vmul.f32 %v745, %v749
        %v752 = vmul.f32 %v746, %v749
        %v753 = vmul.f32 %v747, %v749
        %v754 = vadd.f32 %v732, %v750
        %v755 = vadd.f32 %v733, %v751
        %v756 = vadd.f32 %v734, %v752
        %v757 = vadd.f32 %v735, %v753
        %758 = vrot.lane.b32.xlu0 %v690, 16
        %v759 = vpop.permute.xlu0 %758
        %760 = vrot.lane.b32.xlu0 %v692, 16
        %v761 = vpop.permute.xlu0 %760
        %762 = vrot.lane.b32.xlu0 %v691, 16
        %v763 = vpop.permute.xlu0 %762
        %764 = vrot.lane.b32.xlu0 %v693, 16
        %v765 = vpop.permute.xlu0 %764
        %v766 = vsel %vm408, %v759, %v763
        %v767 = vsel %vm408, %v761, %v765
        %v768 = vsel %vm408, %v763, %v759
        %v769 = vsel %vm408, %v765, %v761
        %v770 = vmul.f32 %v768, %v307
        %v771 = vmul.f32 %v766, %v308
        %v772 = vmul.f32 %v769, %v309
        %v773 = vmul.f32 %v767, %v310
        %s774 = sld [smem:[#allocation8 + $0x182]]
        %v775 = vstv %s774
        %v776 = vmul.f32 %v770, %v775
        %v777 = vmul.f32 %v771, %v775
        %v778 = vmul.f32 %v772, %v775
        %v779 = vmul.f32 %v773, %v775
        %v780 = vadd.f32 %v754, %v776
        %v781 = vadd.f32 %v755, %v777
        %v782 = vadd.f32 %v756, %v778
        %v783 = vadd.f32 %v757, %v779
        %784 = vrot.lane.b32.xlu0 %v690, 112
        %v785 = vpop.permute.xlu0 %784
        %786 = vrot.lane.b32.xlu0 %v692, 112
        %v787 = vpop.permute.xlu0 %786
        %788 = vrot.lane.b32.xlu0 %v691, 112
        %v789 = vpop.permute.xlu0 %788
        %790 = vrot.lane.b32.xlu0 %v693, 112
        %v791 = vpop.permute.xlu0 %790
        %v792 = vsel %vm435, %v785, %v789
        %v793 = vsel %vm435, %v787, %v791
        %v794 = vsel %vm435, %v789, %v785
        %v795 = vsel %vm435, %v791, %v787
        %v796 = vmul.f32 %v792, %v312
        %v797 = vmul.f32 %v794, %v313
        %v798 = vmul.f32 %v793, %v314
        %v799 = vmul.f32 %v795, %v315
        %s800 = sld [smem:[#allocation8 + $0x202]]
        %v801 = vstv %s800
        %v802 = vmul.f32 %v796, %v801
        %v803 = vmul.f32 %v797, %v801
        %v804 = vmul.f32 %v798, %v801
        %v805 = vmul.f32 %v799, %v801
        %v806 = vadd.f32 %v780, %v802
        %v807 = vadd.f32 %v781, %v803
        %v808 = vadd.f32 %v782, %v804
        %v809 = vadd.f32 %v783, %v805
        %810 = vrot.lane.b32.xlu0 %v690, 1
        %v811 = vpop.permute.xlu0 %810
        %812 = vrot.lane.b32.xlu0 %v692, 1
        %v813 = vpop.permute.xlu0 %812
        %814 = vrot.lane.b32.xlu0 %v691, 1
        %v815 = vpop.permute.xlu0 %814
        %816 = vrot.lane.b32.xlu0 %v693, 1
        %v817 = vpop.permute.xlu0 %816
        %v818 = vsel %vm462, %v811, %v815
        %v819 = vsel %vm462, %v813, %v817
        %v820 = vsel %vm462, %v815, %v811
        %v821 = vsel %vm462, %v817, %v813
        %v822 = vmul.f32 %v820, %v317
        %v823 = vmul.f32 %v818, %v318
        %v824 = vmul.f32 %v821, %v319
        %v825 = vmul.f32 %v819, %v320
        %s826 = sld [smem:[#allocation8 + $0x282]]
        %v827 = vstv %s826
        %v828 = vmul.f32 %v822, %v827
        %v829 = vmul.f32 %v823, %v827
        %v830 = vmul.f32 %v824, %v827
        %v831 = vmul.f32 %v825, %v827
        %v832 = vadd.f32 %v806, %v828
        %v833 = vadd.f32 %v807, %v829
        %v834 = vadd.f32 %v808, %v830
        %v835 = vadd.f32 %v809, %v831
        %836 = vrot.lane.b32.xlu0 %v690, 127
        %v837 = vpop.permute.xlu0 %836
        %838 = vrot.lane.b32.xlu0 %v692, 127
        %v839 = vpop.permute.xlu0 %838
        %840 = vrot.lane.b32.xlu0 %v691, 127
        %v841 = vpop.permute.xlu0 %840
        %842 = vrot.lane.b32.xlu0 %v693, 127
        %v843 = vpop.permute.xlu0 %842
        %v844 = vsel %vm489, %v837, %v841
        %v845 = vsel %vm489, %v839, %v843
        %v846 = vsel %vm489, %v841, %v837
        %v847 = vsel %vm489, %v843, %v839
        %v848 = vmul.f32 %v844, %v322
        %v849 = vmul.f32 %v846, %v323
        %v850 = vmul.f32 %v845, %v324
        %v851 = vmul.f32 %v847, %v325
        %s852 = sld [smem:[#allocation8 + $0x302]]
        %v853 = vstv %s852
        %v854 = vmul.f32 %v848, %v853
        %v855 = vmul.f32 %v849, %v853
        %v856 = vmul.f32 %v850, %v853
        %v857 = vmul.f32 %v851, %v853
        %v858 = vadd.f32 %v832, %v854
        %v859 = vadd.f32 %v833, %v855
        %v860 = vadd.f32 %v834, %v856
        %v861 = vadd.f32 %v835, %v857
        %v862 = vadd.f32 %v858, %v707
        %v863 = vadd.f32 %v859, %v707
        %v864 = vadd.f32 %v860, %v707
        %v865 = vadd.f32 %v861, %v707
        %s866 = scalar_lea.vmem %s253, 96 [#allocation2]
        %v867 = vld [vmem:[%s866] sm:$0xff]
        %v868 = vld [vmem:[%s866 + $0x8] sm:$0xff]
        %v869 = vld [vmem:[%s866 + $0x10] sm:$0xff]
        %v870 = vld [vmem:[%s866 + $0x18] sm:$0xff]
        %v871 = vadd.f32 %v867, %v868
        %872 = vadd.xlane.f32.xlu0 %v871
        %v873 = vpop.xlane.xlu0 %872
        %v874 = vadd.f32 %v869, %v870
        %875 = vadd.xlane.f32.xlu0 %v874
        %v876 = vpop.xlane.xlu0 %875
        %v877 = vadd.f32 %v873, %v876
        %v878 = vrot.slane %v877, 4
        %v879 = vadd.f32 %v877, %v878
        %v880 = vrot.slane %v879, 2
        %v881 = vadd.f32 %v879, %v880
        %v882 = vrot.slane %v881, 1
        %v883 = vadd.f32 %v881, %v882
        %v884 = vmul.f32 %v883, 0.00024414063
        %s885 = sld [smem:[#allocation8 + $0x3]]
        %v886 = vstv %s885
        %v887 = vmul.f32 %v867, %v886
        %v888 = vmul.f32 %v868, %v886
        %v889 = vmul.f32 %v869, %v886
        %v890 = vmul.f32 %v870, %v886
        %v891 = vrot.slane %v867, 7
        %v892 = vrot.slane %v868, 7
        %v893 = vrot.slane %v869, 7
        %v894 = vrot.slane %v870, 7
        %v895 = vsel %vm356, %v891, %v893
        %v896 = vsel %vm356, %v892, %v894
        %v897 = vsel %vm356, %v893, %v891
        %v898 = vsel %vm356, %v894, %v892
        %v899 = vmul.f32 %v897, %v297
        %v900 = vmul.f32 %v898, %v298
        %v901 = vmul.f32 %v895, %v299
        %v902 = vmul.f32 %v896, %v300
        %s903 = sld [smem:[#allocation8 + $0x83]]
        %v904 = vstv %s903
        %v905 = vmul.f32 %v899, %v904
        %v906 = vmul.f32 %v900, %v904
        %v907 = vmul.f32 %v901, %v904
        %v908 = vmul.f32 %v902, %v904
        %v909 = vadd.f32 %v887, %v905
        %v910 = vadd.f32 %v888, %v906
        %v911 = vadd.f32 %v889, %v907
        %v912 = vadd.f32 %v890, %v908
        %v913 = vrot.slane %v867, 1
        %v914 = vrot.slane %v868, 1
        %v915 = vrot.slane %v869, 1
        %v916 = vrot.slane %v870, 1
        %v917 = vsel %vm379, %v913, %v915
        %v918 = vsel %vm379, %v914, %v916
        %v919 = vsel %vm379, %v915, %v913
        %v920 = vsel %vm379, %v916, %v914
        %v921 = vmul.f32 %v917, %v302
        %v922 = vmul.f32 %v918, %v303
        %v923 = vmul.f32 %v919, %v304
        %v924 = vmul.f32 %v920, %v305
        %s925 = sld [smem:[#allocation8 + $0x103]]
        %v926 = vstv %s925
        %v927 = vmul.f32 %v921, %v926
        %v928 = vmul.f32 %v922, %v926
        %v929 = vmul.f32 %v923, %v926
        %v930 = vmul.f32 %v924, %v926
        %v931 = vadd.f32 %v909, %v927
        %v932 = vadd.f32 %v910, %v928
        %v933 = vadd.f32 %v911, %v929
        %v934 = vadd.f32 %v912, %v930
        %935 = vrot.lane.b32.xlu0 %v867, 16
        %v936 = vpop.permute.xlu0 %935
        %937 = vrot.lane.b32.xlu0 %v869, 16
        %v938 = vpop.permute.xlu0 %937
        %939 = vrot.lane.b32.xlu0 %v868, 16
        %v940 = vpop.permute.xlu0 %939
        %941 = vrot.lane.b32.xlu0 %v870, 16
        %v942 = vpop.permute.xlu0 %941
        %v943 = vsel %vm408, %v936, %v940
        %v944 = vsel %vm408, %v938, %v942
        %v945 = vsel %vm408, %v940, %v936
        %v946 = vsel %vm408, %v942, %v938
        %v947 = vmul.f32 %v945, %v307
        %v948 = vmul.f32 %v943, %v308
        %v949 = vmul.f32 %v946, %v309
        %v950 = vmul.f32 %v944, %v310
        %s951 = sld [smem:[#allocation8 + $0x183]]
        %v952 = vstv %s951
        %v953 = vmul.f32 %v947, %v952
        %v954 = vmul.f32 %v948, %v952
        %v955 = vmul.f32 %v949, %v952
        %v956 = vmul.f32 %v950, %v952
        %v957 = vadd.f32 %v931, %v953
        %v958 = vadd.f32 %v932, %v954
        %v959 = vadd.f32 %v933, %v955
        %v960 = vadd.f32 %v934, %v956
        %961 = vrot.lane.b32.xlu0 %v867, 112
        %v962 = vpop.permute.xlu0 %961
        %963 = vrot.lane.b32.xlu0 %v869, 112
        %v964 = vpop.permute.xlu0 %963
        %965 = vrot.lane.b32.xlu0 %v868, 112
        %v966 = vpop.permute.xlu0 %965
        %967 = vrot.lane.b32.xlu0 %v870, 112
        %v968 = vpop.permute.xlu0 %967
        %v969 = vsel %vm435, %v962, %v966
        %v970 = vsel %vm435, %v964, %v968
        %v971 = vsel %vm435, %v966, %v962
        %v972 = vsel %vm435, %v968, %v964
        %v973 = vmul.f32 %v969, %v312
        %v974 = vmul.f32 %v971, %v313
        %v975 = vmul.f32 %v970, %v314
        %v976 = vmul.f32 %v972, %v315
        %s977 = sld [smem:[#allocation8 + $0x203]]
        %v978 = vstv %s977
        %v979 = vmul.f32 %v973, %v978
        %v980 = vmul.f32 %v974, %v978
        %v981 = vmul.f32 %v975, %v978
        %v982 = vmul.f32 %v976, %v978
        %v983 = vadd.f32 %v957, %v979
        %v984 = vadd.f32 %v958, %v980
        %v985 = vadd.f32 %v959, %v981
        %v986 = vadd.f32 %v960, %v982
        %987 = vrot.lane.b32.xlu0 %v867, 1
        %v988 = vpop.permute.xlu0 %987
        %989 = vrot.lane.b32.xlu0 %v869, 1
        %v990 = vpop.permute.xlu0 %989
        %991 = vrot.lane.b32.xlu0 %v868, 1
        %v992 = vpop.permute.xlu0 %991
        %993 = vrot.lane.b32.xlu0 %v870, 1
        %v994 = vpop.permute.xlu0 %993
        %v995 = vsel %vm462, %v988, %v992
        %v996 = vsel %vm462, %v990, %v994
        %v997 = vsel %vm462, %v992, %v988
        %v998 = vsel %vm462, %v994, %v990
        %v999 = vmul.f32 %v997, %v317
        %v1000 = vmul.f32 %v995, %v318
        %v1001 = vmul.f32 %v998, %v319
        %v1002 = vmul.f32 %v996, %v320
        %s1003 = sld [smem:[#allocation8 + $0x283]]
        %v1004 = vstv %s1003
        %v1005 = vmul.f32 %v999, %v1004
        %v1006 = vmul.f32 %v1000, %v1004
        %v1007 = vmul.f32 %v1001, %v1004
        %v1008 = vmul.f32 %v1002, %v1004
        %v1009 = vadd.f32 %v983, %v1005
        %v1010 = vadd.f32 %v984, %v1006
        %v1011 = vadd.f32 %v985, %v1007
        %v1012 = vadd.f32 %v986, %v1008
        %1013 = vrot.lane.b32.xlu0 %v867, 127
        %v1014 = vpop.permute.xlu0 %1013
        %1015 = vrot.lane.b32.xlu0 %v869, 127
        %v1016 = vpop.permute.xlu0 %1015
        %1017 = vrot.lane.b32.xlu0 %v868, 127
        %v1018 = vpop.permute.xlu0 %1017
        %1019 = vrot.lane.b32.xlu0 %v870, 127
        %v1020 = vpop.permute.xlu0 %1019
        %v1021 = vsel %vm489, %v1014, %v1018
        %v1022 = vsel %vm489, %v1016, %v1020
        %v1023 = vsel %vm489, %v1018, %v1014
        %v1024 = vsel %vm489, %v1020, %v1016
        %v1025 = vmul.f32 %v1021, %v322
        %v1026 = vmul.f32 %v1023, %v323
        %v1027 = vmul.f32 %v1022, %v324
        %v1028 = vmul.f32 %v1024, %v325
        %s1029 = sld [smem:[#allocation8 + $0x303]]
        %v1030 = vstv %s1029
        %v1031 = vmul.f32 %v1025, %v1030
        %v1032 = vmul.f32 %v1026, %v1030
        %v1033 = vmul.f32 %v1027, %v1030
        %v1034 = vmul.f32 %v1028, %v1030
        %v1035 = vadd.f32 %v1009, %v1031
        %v1036 = vadd.f32 %v1010, %v1032
        %v1037 = vadd.f32 %v1011, %v1033
        %v1038 = vadd.f32 %v1012, %v1034
        %v1039 = vadd.f32 %v1035, %v884
        %v1040 = vadd.f32 %v1036, %v884
        %v1041 = vadd.f32 %v1037, %v884
        %v1042 = vadd.f32 %v1038, %v884
        %s1043 = sld [smem:[#allocation9]]
        %v1044 = vstv %s1043
        %v1045 = vmul.f32 %v508, %v1044
        %v1046 = vmul.f32 %v509, %v1044
        %v1047 = vmul.f32 %v510, %v1044
        %v1048 = vmul.f32 %v511, %v1044
        %s1049 = sld [smem:[#allocation9 + $0x1]]
        %v1050 = vstv %s1049
        %v1051 = vmul.f32 %v685, %v1050
        %v1052 = vmul.f32 %v686, %v1050
        %v1053 = vmul.f32 %v687, %v1050
        %v1054 = vmul.f32 %v688, %v1050
        %v1055 = vadd.f32 %v1045, %v1051
        %v1056 = vadd.f32 %v1046, %v1052
        %v1057 = vadd.f32 %v1047, %v1053
        %v1058 = vadd.f32 %v1048, %v1054
        %s1059 = sld [smem:[#allocation9 + $0x2]]
        %v1060 = vstv %s1059
        %v1061 = vmul.f32 %v862, %v1060
        %v1062 = vmul.f32 %v863, %v1060
        %v1063 = vmul.f32 %v864, %v1060
        %v1064 = vmul.f32 %v865, %v1060
        %v1065 = vadd.f32 %v1055, %v1061
        %v1066 = vadd.f32 %v1056, %v1062
        %v1067 = vadd.f32 %v1057, %v1063
        %v1068 = vadd.f32 %v1058, %v1064
        %s1069 = sld [smem:[#allocation9 + $0x3]]
        %v1070 = vstv %s1069
        %v1071 = vmul.f32 %v1039, %v1070
        %v1072 = vmul.f32 %v1040, %v1070
        %v1073 = vmul.f32 %v1041, %v1070
        %v1074 = vmul.f32 %v1042, %v1070
        %v1075 = vadd.f32 %v1065, %v1071
        %v1076 = vadd.f32 %v1066, %v1072
        %v1077 = vadd.f32 %v1067, %v1073
        %v1078 = vadd.f32 %v1068, %v1074
        %s1079 = sld [smem:[#allocation11]]
        %v1080 = vstv %s1079
        %v1081 = vadd.f32 %v1075, %v1080
        %v1082 = vadd.f32 %v1076, %v1080
        %v1083 = vadd.f32 %v1077, %v1080
        %v1084 = vadd.f32 %v1078, %v1080
        %v1085 = vmul.f32 %v1081, 0.044715
        %v1086 = vmul.f32 %v1082, 0.044715
        %v1087 = vmul.f32 %v1083, 0.044715
        %v1088 = vmul.f32 %v1084, 0.044715
        %v1089 = vmul.f32 %v1085, %v1081
        %v1090 = vmul.f32 %v1086, %v1082
        %v1091 = vmul.f32 %v1087, %v1083
        %v1092 = vmul.f32 %v1088, %v1084
        %v1093 = vmul.f32 %v1089, %v1081
        %v1094 = vmul.f32 %v1090, %v1082
        %v1095 = vmul.f32 %v1091, %v1083
        %v1096 = vmul.f32 %v1092, %v1084
        %v1097 = vadd.f32 %v1081, %v1093
        %v1098 = vadd.f32 %v1082, %v1094
        %v1099 = vadd.f32 %v1083, %v1095
        %v1100 = vadd.f32 %v1084, %v1096
        %v1101 = vmul.f32 %v1097, 0.7978846
        %v1102 = vmul.f32 %v1098, 0.7978846
        %v1103 = vmul.f32 %v1099, 0.7978846
        %v1104 = vmul.f32 %v1100, 0.7978846
        %v1105 = vtanh.pop %v1101
        %v1106 = vtanh.pop %v1102
        %v1107 = vtanh.pop %v1103
        %v1108 = vtanh.pop %v1104
        %v1109 = vmul.f32 %v1081, 0.5
        %v1110 = vmul.f32 %v1082, 0.5
        %v1111 = vmul.f32 %v1083, 0.5
        %v1112 = vmul.f32 %v1084, 0.5
        %v1113 = vadd.f32 %v1105, 1.0
        %v1114 = vadd.f32 %v1106, 1.0
        %v1115 = vadd.f32 %v1107, 1.0
        %v1116 = vadd.f32 %v1108, 1.0
        %v1117 = vmul.f32 %v1109, %v1113
        %v1118 = vmul.f32 %v1110, %v1114
        %v1119 = vmul.f32 %v1111, %v1115
        %v1120 = vmul.f32 %v1112, %v1116
        %1121 = vst [vmem:[%s296] sm:$0xff] %v1117
        %1122 = vst [vmem:[%s296 + $0x8] sm:$0xff] %v1118
        %1123 = vst [vmem:[%s296 + $0x10] sm:$0xff] %v1119
        %1124 = vst [vmem:[%s296 + $0x18] sm:$0xff] %v1120
        %s1125 = sld [smem:[#allocation9 + $0x80]]
        %v1126 = vstv %s1125
        %v1127 = vmul.f32 %v508, %v1126
        %v1128 = vmul.f32 %v509, %v1126
        %v1129 = vmul.f32 %v510, %v1126
        %v1130 = vmul.f32 %v511, %v1126
        %s1131 = sld [smem:[#allocation9 + $0x81]]
        %v1132 = vstv %s1131
        %v1133 = vmul.f32 %v685, %v1132
        %v1134 = vmul.f32 %v686, %v1132
        %v1135 = vmul.f32 %v687, %v1132
        %v1136 = vmul.f32 %v688, %v1132
        %v1137 = vadd.f32 %v1127, %v1133
        %v1138 = vadd.f32 %v1128, %v1134
        %v1139 = vadd.f32 %v1129, %v1135
        %v1140 = vadd.f32 %v1130, %v1136
        %s1141 = sld [smem:[#allocation9 + $0x82]]
        %v1142 = vstv %s1141
        %v1143 = vmul.f32 %v862, %v1142
        %v1144 = vmul.f32 %v863, %v1142
        %v1145 = vmul.f32 %v864, %v1142
        %v1146 = vmul.f32 %v865, %v1142
        %v1147 = vadd.f32 %v1137, %v1143
        %v1148 = vadd.f32 %v1138, %v1144
        %v1149 = vadd.f32 %v1139, %v1145
        %v1150 = vadd.f32 %v1140, %v1146
        %s1151 = sld [smem:[#allocation9 + $0x83]]
        %v1152 = vstv %s1151
        %v1153 = vmul.f32 %v1039, %v1152
        %v1154 = vmul.f32 %v1040, %v1152
        %v1155 = vmul.f32 %v1041, %v1152
        %v1156 = vmul.f32 %v1042, %v1152
        %v1157 = vadd.f32 %v1147, %v1153
        %v1158 = vadd.f32 %v1148, %v1154
        %v1159 = vadd.f32 %v1149, %v1155
        %v1160 = vadd.f32 %v1150, %v1156
        %s1161 = sld [smem:[#allocation11 + $0x1]]
        %v1162 = vstv %s1161
        %v1163 = vadd.f32 %v1157, %v1162
        %v1164 = vadd.f32 %v1158, %v1162
        %v1165 = vadd.f32 %v1159, %v1162
        %v1166 = vadd.f32 %v1160, %v1162
        %v1167 = vmul.f32 %v1163, 0.044715
        %v1168 = vmul.f32 %v1164, 0.044715
        %v1169 = vmul.f32 %v1165, 0.044715
        %v1170 = vmul.f32 %v1166, 0.044715
        %v1171 = vmul.f32 %v1167, %v1163
        %v1172 = vmul.f32 %v1168, %v1164
        %v1173 = vmul.f32 %v1169, %v1165
        %v1174 = vmul.f32 %v1170, %v1166
        %v1175 = vmul.f32 %v1171, %v1163
        %v1176 = vmul.f32 %v1172, %v1164
        %v1177 = vmul.f32 %v1173, %v1165
        %v1178 = vmul.f32 %v1174, %v1166
        %v1179 = vadd.f32 %v1163, %v1175
        %v1180 = vadd.f32 %v1164, %v1176
        %v1181 = vadd.f32 %v1165, %v1177
        %v1182 = vadd.f32 %v1166, %v1178
        %v1183 = vmul.f32 %v1179, 0.7978846
        %v1184 = vmul.f32 %v1180, 0.7978846
        %v1185 = vmul.f32 %v1181, 0.7978846
        %v1186 = vmul.f32 %v1182, 0.7978846
        %v1187 = vtanh.pop %v1183
        %v1188 = vtanh.pop %v1184
        %v1189 = vtanh.pop %v1185
        %v1190 = vtanh.pop %v1186
        %v1191 = vmul.f32 %v1163, 0.5
        %v1192 = vmul.f32 %v1164, 0.5
        %v1193 = vmul.f32 %v1165, 0.5
        %v1194 = vmul.f32 %v1166, 0.5
        %v1195 = vadd.f32 %v1187, 1.0
        %v1196 = vadd.f32 %v1188, 1.0
        %v1197 = vadd.f32 %v1189, 1.0
        %v1198 = vadd.f32 %v1190, 1.0
        %v1199 = vmul.f32 %v1191, %v1195
        %v1200 = vmul.f32 %v1192, %v1196
        %v1201 = vmul.f32 %v1193, %v1197
        %v1202 = vmul.f32 %v1194, %v1198
        %s1203 = scalar_lea.vmem %s296, 32 [#allocation12]
        %1204 = vst [vmem:[%s1203] sm:$0xff] %v1199
        %1205 = vst [vmem:[%s1203 + $0x8] sm:$0xff] %v1200
        %1206 = vst [vmem:[%s1203 + $0x10] sm:$0xff] %v1201
        %1207 = vst [vmem:[%s1203 + $0x18] sm:$0xff] %v1202
        %s1208 = sld [smem:[#allocation9 + $0x100]]
        %v1209 = vstv %s1208
        %v1210 = vmul.f32 %v508, %v1209
        %v1211 = vmul.f32 %v509, %v1209
        %v1212 = vmul.f32 %v510, %v1209
        %v1213 = vmul.f32 %v511, %v1209
        %s1214 = sld [smem:[#allocation9 + $0x101]]
        %v1215 = vstv %s1214
        %v1216 = vmul.f32 %v685, %v1215
        %v1217 = vmul.f32 %v686, %v1215
        %v1218 = vmul.f32 %v687, %v1215
        %v1219 = vmul.f32 %v688, %v1215
        %v1220 = vadd.f32 %v1210, %v1216
        %v1221 = vadd.f32 %v1211, %v1217
        %v1222 = vadd.f32 %v1212, %v1218
        %v1223 = vadd.f32 %v1213, %v1219
        %s1224 = sld [smem:[#allocation9 + $0x102]]
        %v1225 = vstv %s1224
        %v1226 = vmul.f32 %v862, %v1225
        %v1227 = vmul.f32 %v863, %v1225
        %v1228 = vmul.f32 %v864, %v1225
        %v1229 = vmul.f32 %v865, %v1225
        %v1230 = vadd.f32 %v1220, %v1226
        %v1231 = vadd.f32 %v1221, %v1227
        %v1232 = vadd.f32 %v1222, %v1228
        %v1233 = vadd.f32 %v1223, %v1229
        %s1234 = sld [smem:[#allocation9 + $0x103]]
        %v1235 = vstv %s1234
        %v1236 = vmul.f32 %v1039, %v1235
        %v1237 = vmul.f32 %v1040, %v1235
        %v1238 = vmul.f32 %v1041, %v1235
        %v1239 = vmul.f32 %v1042, %v1235
        %v1240 = vadd.f32 %v1230, %v1236
        %v1241 = vadd.f32 %v1231, %v1237
        %v1242 = vadd.f32 %v1232, %v1238
        %v1243 = vadd.f32 %v1233, %v1239
        %s1244 = sld [smem:[#allocation11 + $0x2]]
        %v1245 = vstv %s1244
        %v1246 = vadd.f32 %v1240, %v1245
        %v1247 = vadd.f32 %v1241, %v1245
        %v1248 = vadd.f32 %v1242, %v1245
        %v1249 = vadd.f32 %v1243, %v1245
        %v1250 = vmul.f32 %v1246, 0.044715
        %v1251 = vmul.f32 %v1247, 0.044715
        %v1252 = vmul.f32 %v1248, 0.044715
        %v1253 = vmul.f32 %v1249, 0.044715
        %v1254 = vmul.f32 %v1250, %v1246
        %v1255 = vmul.f32 %v1251, %v1247
        %v1256 = vmul.f32 %v1252, %v1248
        %v1257 = vmul.f32 %v1253, %v1249
        %v1258 = vmul.f32 %v1254, %v1246
        %v1259 = vmul.f32 %v1255, %v1247
        %v1260 = vmul.f32 %v1256, %v1248
        %v1261 = vmul.f32 %v1257, %v1249
        %v1262 = vadd.f32 %v1246, %v1258
        %v1263 = vadd.f32 %v1247, %v1259
        %v1264 = vadd.f32 %v1248, %v1260
        %v1265 = vadd.f32 %v1249, %v1261
        %v1266 = vmul.f32 %v1262, 0.7978846
        %v1267 = vmul.f32 %v1263, 0.7978846
        %v1268 = vmul.f32 %v1264, 0.7978846
        %v1269 = vmul.f32 %v1265, 0.7978846
        %v1270 = vtanh.pop %v1266
        %v1271 = vtanh.pop %v1267
        %v1272 = vtanh.pop %v1268
        %v1273 = vtanh.pop %v1269
        %v1274 = vmul.f32 %v1246, 0.5
        %v1275 = vmul.f32 %v1247, 0.5
        %v1276 = vmul.f32 %v1248, 0.5
        %v1277 = vmul.f32 %v1249, 0.5
        %v1278 = vadd.f32 %v1270, 1.0
        %v1279 = vadd.f32 %v1271, 1.0
        %v1280 = vadd.f32 %v1272, 1.0
        %v1281 = vadd.f32 %v1273, 1.0
        %v1282 = vmul.f32 %v1274, %v1278
        %v1283 = vmul.f32 %v1275, %v1279
        %v1284 = vmul.f32 %v1276, %v1280
        %v1285 = vmul.f32 %v1277, %v1281
        %s1286 = scalar_lea.vmem %s296, 64 [#allocation12]
        %1287 = vst [vmem:[%s1286] sm:$0xff] %v1282
        %1288 = vst [vmem:[%s1286 + $0x8] sm:$0xff] %v1283
        %1289 = vst [vmem:[%s1286 + $0x10] sm:$0xff] %v1284
        %1290 = vst [vmem:[%s1286 + $0x18] sm:$0xff] %v1285
        %s1291 = sld [smem:[#allocation9 + $0x180]]
        %v1292 = vstv %s1291
        %v1293 = vmul.f32 %v508, %v1292
        %v1294 = vmul.f32 %v509, %v1292
        %v1295 = vmul.f32 %v510, %v1292
        %v1296 = vmul.f32 %v511, %v1292
        %s1297 = sld [smem:[#allocation9 + $0x181]]
        %v1298 = vstv %s1297
        %v1299 = vmul.f32 %v685, %v1298
        %v1300 = vmul.f32 %v686, %v1298
        %v1301 = vmul.f32 %v687, %v1298
        %v1302 = vmul.f32 %v688, %v1298
        %v1303 = vadd.f32 %v1293, %v1299
        %v1304 = vadd.f32 %v1294, %v1300
        %v1305 = vadd.f32 %v1295, %v1301
        %v1306 = vadd.f32 %v1296, %v1302
        %s1307 = sld [smem:[#allocation9 + $0x182]]
        %v1308 = vstv %s1307
        %v1309 = vmul.f32 %v862, %v1308
        %v1310 = vmul.f32 %v863, %v1308
        %v1311 = vmul.f32 %v864, %v1308
        %v1312 = vmul.f32 %v865, %v1308
        %v1313 = vadd.f32 %v1303, %v1309
        %v1314 = vadd.f32 %v1304, %v1310
        %v1315 = vadd.f32 %v1305, %v1311
        %v1316 = vadd.f32 %v1306, %v1312
        %s1317 = sld [smem:[#allocation9 + $0x183]]
        %v1318 = vstv %s1317
        %v1319 = vmul.f32 %v1039, %v1318
        %v1320 = vmul.f32 %v1040, %v1318
        %v1321 = vmul.f32 %v1041, %v1318
        %v1322 = vmul.f32 %v1042, %v1318
        %v1323 = vadd.f32 %v1313, %v1319
        %v1324 = vadd.f32 %v1314, %v1320
        %v1325 = vadd.f32 %v1315, %v1321
        %v1326 = vadd.f32 %v1316, %v1322
        %s1327 = sld [smem:[#allocation11 + $0x3]]
        %v1328 = vstv %s1327
        %v1329 = vadd.f32 %v1323, %v1328
        %v1330 = vadd.f32 %v1324, %v1328
        %v1331 = vadd.f32 %v1325, %v1328
        %v1332 = vadd.f32 %v1326, %v1328
        %v1333 = vmul.f32 %v1329, 0.044715
        %v1334 = vmul.f32 %v1330, 0.044715
        %v1335 = vmul.f32 %v1331, 0.044715
        %v1336 = vmul.f32 %v1332, 0.044715
        %v1337 = vmul.f32 %v1333, %v1329
        %v1338 = vmul.f32 %v1334, %v1330
        %v1339 = vmul.f32 %v1335, %v1331
        %v1340 = vmul.f32 %v1336, %v1332
        %v1341 = vmul.f32 %v1337, %v1329
        %v1342 = vmul.f32 %v1338, %v1330
        %v1343 = vmul.f32 %v1339, %v1331
        %v1344 = vmul.f32 %v1340, %v1332
        %v1345 = vadd.f32 %v1329, %v1341
        %v1346 = vadd.f32 %v1330, %v1342
        %v1347 = vadd.f32 %v1331, %v1343
        %v1348 = vadd.f32 %v1332, %v1344
        %v1349 = vmul.f32 %v1345, 0.7978846
        %v1350 = vmul.f32 %v1346, 0.7978846
        %v1351 = vmul.f32 %v1347, 0.7978846
        %v1352 = vmul.f32 %v1348, 0.7978846
        %v1353 = vtanh.pop %v1349
        %v1354 = vtanh.pop %v1350
        %v1355 = vtanh.pop %v1351
        %v1356 = vtanh.pop %v1352
        %v1357 = vmul.f32 %v1329, 0.5
        %v1358 = vmul.f32 %v1330, 0.5
        %v1359 = vmul.f32 %v1331, 0.5
        %v1360 = vmul.f32 %v1332, 0.5
        %v1361 = vadd.f32 %v1353, 1.0
        %v1362 = vadd.f32 %v1354, 1.0
        %v1363 = vadd.f32 %v1355, 1.0
        %v1364 = vadd.f32 %v1356, 1.0
        %v1365 = vmul.f32 %v1357, %v1361
        %v1366 = vmul.f32 %v1358, %v1362
        %v1367 = vmul.f32 %v1359, %v1363
        %v1368 = vmul.f32 %v1360, %v1364
        %s1369 = scalar_lea.vmem %s296, 96 [#allocation12]
        %1370 = vst [vmem:[%s1369] sm:$0xff] %v1365
        %1371 = vst [vmem:[%s1369 + $0x8] sm:$0xff] %v1366
        %1372 = vst [vmem:[%s1369 + $0x10] sm:$0xff] %v1367
        %1373 = vst [vmem:[%s1369 + $0x18] sm:$0xff] %v1368
        %s1374 = sld [smem:[#allocation9 + $0x200]]
        %v1375 = vstv %s1374
        %v1376 = vmul.f32 %v508, %v1375
        %v1377 = vmul.f32 %v509, %v1375
        %v1378 = vmul.f32 %v510, %v1375
        %v1379 = vmul.f32 %v511, %v1375
        %s1380 = sld [smem:[#allocation9 + $0x201]]
        %v1381 = vstv %s1380
        %v1382 = vmul.f32 %v685, %v1381
        %v1383 = vmul.f32 %v686, %v1381
        %v1384 = vmul.f32 %v687, %v1381
        %v1385 = vmul.f32 %v688, %v1381
        %v1386 = vadd.f32 %v1376, %v1382
        %v1387 = vadd.f32 %v1377, %v1383
        %v1388 = vadd.f32 %v1378, %v1384
        %v1389 = vadd.f32 %v1379, %v1385
        %s1390 = sld [smem:[#allocation9 + $0x202]]
        %v1391 = vstv %s1390
        %v1392 = vmul.f32 %v862, %v1391
        %v1393 = vmul.f32 %v863, %v1391
        %v1394 = vmul.f32 %v864, %v1391
        %v1395 = vmul.f32 %v865, %v1391
        %v1396 = vadd.f32 %v1386, %v1392
        %v1397 = vadd.f32 %v1387, %v1393
        %v1398 = vadd.f32 %v1388, %v1394
        %v1399 = vadd.f32 %v1389, %v1395
        %s1400 = sld [smem:[#allocation9 + $0x203]]
        %v1401 = vstv %s1400
        %v1402 = vmul.f32 %v1039, %v1401
        %v1403 = vmul.f32 %v1040, %v1401
        %v1404 = vmul.f32 %v1041, %v1401
        %v1405 = vmul.f32 %v1042, %v1401
        %v1406 = vadd.f32 %v1396, %v1402
        %v1407 = vadd.f32 %v1397, %v1403
        %v1408 = vadd.f32 %v1398, %v1404
        %v1409 = vadd.f32 %v1399, %v1405
        %s1410 = sld [smem:[#allocation11 + $0x4]]
        %v1411 = vstv %s1410
        %v1412 = vadd.f32 %v1406, %v1411
        %v1413 = vadd.f32 %v1407, %v1411
        %v1414 = vadd.f32 %v1408, %v1411
        %v1415 = vadd.f32 %v1409, %v1411
        %v1416 = vmul.f32 %v1412, 0.044715
        %v1417 = vmul.f32 %v1413, 0.044715
        %v1418 = vmul.f32 %v1414, 0.044715
        %v1419 = vmul.f32 %v1415, 0.044715
        %v1420 = vmul.f32 %v1416, %v1412
        %v1421 = vmul.f32 %v1417, %v1413
        %v1422 = vmul.f32 %v1418, %v1414
        %v1423 = vmul.f32 %v1419, %v1415
        %v1424 = vmul.f32 %v1420, %v1412
        %v1425 = vmul.f32 %v1421, %v1413
        %v1426 = vmul.f32 %v1422, %v1414
        %v1427 = vmul.f32 %v1423, %v1415
        %v1428 = vadd.f32 %v1412, %v1424
        %v1429 = vadd.f32 %v1413, %v1425
        %v1430 = vadd.f32 %v1414, %v1426
        %v1431 = vadd.f32 %v1415, %v1427
        %v1432 = vmul.f32 %v1428, 0.7978846
        %v1433 = vmul.f32 %v1429, 0.7978846
        %v1434 = vmul.f32 %v1430, 0.7978846
        %v1435 = vmul.f32 %v1431, 0.7978846
        %v1436 = vtanh.pop %v1432
        %v1437 = vtanh.pop %v1433
        %v1438 = vtanh.pop %v1434
        %v1439 = vtanh.pop %v1435
        %v1440 = vmul.f32 %v1412, 0.5
        %v1441 = vmul.f32 %v1413, 0.5
        %v1442 = vmul.f32 %v1414, 0.5
        %v1443 = vmul.f32 %v1415, 0.5
        %v1444 = vadd.f32 %v1436, 1.0
        %v1445 = vadd.f32 %v1437, 1.0
        %v1446 = vadd.f32 %v1438, 1.0
        %v1447 = vadd.f32 %v1439, 1.0
        %v1448 = vmul.f32 %v1440, %v1444
        %v1449 = vmul.f32 %v1441, %v1445
        %v1450 = vmul.f32 %v1442, %v1446
        %v1451 = vmul.f32 %v1443, %v1447
        %s1452 = scalar_lea.vmem %s296, 128 [#allocation12]
        %1453 = vst [vmem:[%s1452] sm:$0xff] %v1448
        %1454 = vst [vmem:[%s1452 + $0x8] sm:$0xff] %v1449
        %1455 = vst [vmem:[%s1452 + $0x10] sm:$0xff] %v1450
        %1456 = vst [vmem:[%s1452 + $0x18] sm:$0xff] %v1451
        %s1457 = sld [smem:[#allocation9 + $0x280]]
        %v1458 = vstv %s1457
        %v1459 = vmul.f32 %v508, %v1458
        %v1460 = vmul.f32 %v509, %v1458
        %v1461 = vmul.f32 %v510, %v1458
        %v1462 = vmul.f32 %v511, %v1458
        %s1463 = sld [smem:[#allocation9 + $0x281]]
        %v1464 = vstv %s1463
        %v1465 = vmul.f32 %v685, %v1464
        %v1466 = vmul.f32 %v686, %v1464
        %v1467 = vmul.f32 %v687, %v1464
        %v1468 = vmul.f32 %v688, %v1464
        %v1469 = vadd.f32 %v1459, %v1465
        %v1470 = vadd.f32 %v1460, %v1466
        %v1471 = vadd.f32 %v1461, %v1467
        %v1472 = vadd.f32 %v1462, %v1468
        %s1473 = sld [smem:[#allocation9 + $0x282]]
        %v1474 = vstv %s1473
        %v1475 = vmul.f32 %v862, %v1474
        %v1476 = vmul.f32 %v863, %v1474
        %v1477 = vmul.f32 %v864, %v1474
        %v1478 = vmul.f32 %v865, %v1474
        %v1479 = vadd.f32 %v1469, %v1475
        %v1480 = vadd.f32 %v1470, %v1476
        %v1481 = vadd.f32 %v1471, %v1477
        %v1482 = vadd.f32 %v1472, %v1478
        %s1483 = sld [smem:[#allocation9 + $0x283]]
        %v1484 = vstv %s1483
        %v1485 = vmul.f32 %v1039, %v1484
        %v1486 = vmul.f32 %v1040, %v1484
        %v1487 = vmul.f32 %v1041, %v1484
        %v1488 = vmul.f32 %v1042, %v1484
        %v1489 = vadd.f32 %v1479, %v1485
        %v1490 = vadd.f32 %v1480, %v1486
        %v1491 = vadd.f32 %v1481, %v1487
        %v1492 = vadd.f32 %v1482, %v1488
        %s1493 = sld [smem:[#allocation11 + $0x5]]
        %v1494 = vstv %s1493
        %v1495 = vadd.f32 %v1489, %v1494
        %v1496 = vadd.f32 %v1490, %v1494
        %v1497 = vadd.f32 %v1491, %v1494
        %v1498 = vadd.f32 %v1492, %v1494
        %v1499 = vmul.f32 %v1495, 0.044715
        %v1500 = vmul.f32 %v1496, 0.044715
        %v1501 = vmul.f32 %v1497, 0.044715
        %v1502 = vmul.f32 %v1498, 0.044715
        %v1503 = vmul.f32 %v1499, %v1495
        %v1504 = vmul.f32 %v1500, %v1496
        %v1505 = vmul.f32 %v1501, %v1497
        %v1506 = vmul.f32 %v1502, %v1498
        %v1507 = vmul.f32 %v1503, %v1495
        %v1508 = vmul.f32 %v1504, %v1496
        %v1509 = vmul.f32 %v1505, %v1497
        %v1510 = vmul.f32 %v1506, %v1498
        %v1511 = vadd.f32 %v1495, %v1507
        %v1512 = vadd.f32 %v1496, %v1508
        %v1513 = vadd.f32 %v1497, %v1509
        %v1514 = vadd.f32 %v1498, %v1510
        %v1515 = vmul.f32 %v1511, 0.7978846
        %v1516 = vmul.f32 %v1512, 0.7978846
        %v1517 = vmul.f32 %v1513, 0.7978846
        %v1518 = vmul.f32 %v1514, 0.7978846
        %v1519 = vtanh.pop %v1515
        %v1520 = vtanh.pop %v1516
        %v1521 = vtanh.pop %v1517
        %v1522 = vtanh.pop %v1518
        %v1523 = vmul.f32 %v1495, 0.5
        %v1524 = vmul.f32 %v1496, 0.5
        %v1525 = vmul.f32 %v1497, 0.5
        %v1526 = vmul.f32 %v1498, 0.5
        %v1527 = vadd.f32 %v1519, 1.0
        %v1528 = vadd.f32 %v1520, 1.0
        %v1529 = vadd.f32 %v1521, 1.0
        %v1530 = vadd.f32 %v1522, 1.0
        %v1531 = vmul.f32 %v1523, %v1527
        %v1532 = vmul.f32 %v1524, %v1528
        %v1533 = vmul.f32 %v1525, %v1529
        %v1534 = vmul.f32 %v1526, %v1530
        %s1535 = scalar_lea.vmem %s296, 160 [#allocation12]
        %1536 = vst [vmem:[%s1535] sm:$0xff] %v1531
        %1537 = vst [vmem:[%s1535 + $0x8] sm:$0xff] %v1532
        %1538 = vst [vmem:[%s1535 + $0x10] sm:$0xff] %v1533
        %1539 = vst [vmem:[%s1535 + $0x18] sm:$0xff] %v1534
        %s1540 = sld [smem:[#allocation9 + $0x300]]
        %v1541 = vstv %s1540
        %v1542 = vmul.f32 %v508, %v1541
        %v1543 = vmul.f32 %v509, %v1541
        %v1544 = vmul.f32 %v510, %v1541
        %v1545 = vmul.f32 %v511, %v1541
        %s1546 = sld [smem:[#allocation9 + $0x301]]
        %v1547 = vstv %s1546
        %v1548 = vmul.f32 %v685, %v1547
        %v1549 = vmul.f32 %v686, %v1547
        %v1550 = vmul.f32 %v687, %v1547
        %v1551 = vmul.f32 %v688, %v1547
        %v1552 = vadd.f32 %v1542, %v1548
        %v1553 = vadd.f32 %v1543, %v1549
        %v1554 = vadd.f32 %v1544, %v1550
        %v1555 = vadd.f32 %v1545, %v1551
        %s1556 = sld [smem:[#allocation9 + $0x302]]
        %v1557 = vstv %s1556
        %v1558 = vmul.f32 %v862, %v1557
        %v1559 = vmul.f32 %v863, %v1557
        %v1560 = vmul.f32 %v864, %v1557
        %v1561 = vmul.f32 %v865, %v1557
        %v1562 = vadd.f32 %v1552, %v1558
        %v1563 = vadd.f32 %v1553, %v1559
        %v1564 = vadd.f32 %v1554, %v1560
        %v1565 = vadd.f32 %v1555, %v1561
        %s1566 = sld [smem:[#allocation9 + $0x303]]
        %v1567 = vstv %s1566
        %v1568 = vmul.f32 %v1039, %v1567
        %v1569 = vmul.f32 %v1040, %v1567
        %v1570 = vmul.f32 %v1041, %v1567
        %v1571 = vmul.f32 %v1042, %v1567
        %v1572 = vadd.f32 %v1562, %v1568
        %v1573 = vadd.f32 %v1563, %v1569
        %v1574 = vadd.f32 %v1564, %v1570
        %v1575 = vadd.f32 %v1565, %v1571
        %s1576 = sld [smem:[#allocation11 + $0x6]]
        %v1577 = vstv %s1576
        %v1578 = vadd.f32 %v1572, %v1577
        %v1579 = vadd.f32 %v1573, %v1577
        %v1580 = vadd.f32 %v1574, %v1577
        %v1581 = vadd.f32 %v1575, %v1577
        %v1582 = vmul.f32 %v1578, 0.044715
        %v1583 = vmul.f32 %v1579, 0.044715
        %v1584 = vmul.f32 %v1580, 0.044715
        %v1585 = vmul.f32 %v1581, 0.044715
        %v1586 = vmul.f32 %v1582, %v1578
        %v1587 = vmul.f32 %v1583, %v1579
        %v1588 = vmul.f32 %v1584, %v1580
        %v1589 = vmul.f32 %v1585, %v1581
        %v1590 = vmul.f32 %v1586, %v1578
        %v1591 = vmul.f32 %v1587, %v1579
        %v1592 = vmul.f32 %v1588, %v1580
        %v1593 = vmul.f32 %v1589, %v1581
        %v1594 = vadd.f32 %v1578, %v1590
        %v1595 = vadd.f32 %v1579, %v1591
        %v1596 = vadd.f32 %v1580, %v1592
        %v1597 = vadd.f32 %v1581, %v1593
        %v1598 = vmul.f32 %v1594, 0.7978846
        %v1599 = vmul.f32 %v1595, 0.7978846
        %v1600 = vmul.f32 %v1596, 0.7978846
        %v1601 = vmul.f32 %v1597, 0.7978846
        %v1602 = vtanh.pop %v1598
        %v1603 = vtanh.pop %v1599
        %v1604 = vtanh.pop %v1600
        %v1605 = vtanh.pop %v1601
        %v1606 = vmul.f32 %v1578, 0.5
        %v1607 = vmul.f32 %v1579, 0.5
        %v1608 = vmul.f32 %v1580, 0.5
        %v1609 = vmul.f32 %v1581, 0.5
        %v1610 = vadd.f32 %v1602, 1.0
        %v1611 = vadd.f32 %v1603, 1.0
        %v1612 = vadd.f32 %v1604, 1.0
        %v1613 = vadd.f32 %v1605, 1.0
        %v1614 = vmul.f32 %v1606, %v1610
        %v1615 = vmul.f32 %v1607, %v1611
        %v1616 = vmul.f32 %v1608, %v1612
        %v1617 = vmul.f32 %v1609, %v1613
        %s1618 = scalar_lea.vmem %s296, 192 [#allocation12]
        %1619 = vst [vmem:[%s1618] sm:$0xff] %v1614
        %1620 = vst [vmem:[%s1618 + $0x8] sm:$0xff] %v1615
        %1621 = vst [vmem:[%s1618 + $0x10] sm:$0xff] %v1616
        %1622 = vst [vmem:[%s1618 + $0x18] sm:$0xff] %v1617
        %s1623 = sld [smem:[#allocation9 + $0x380]]
        %v1624 = vstv %s1623
        %v1625 = vmul.f32 %v508, %v1624
        %v1626 = vmul.f32 %v509, %v1624
        %v1627 = vmul.f32 %v510, %v1624
        %v1628 = vmul.f32 %v511, %v1624
        %s1629 = sld [smem:[#allocation9 + $0x381]]
        %v1630 = vstv %s1629
        %v1631 = vmul.f32 %v685, %v1630
        %v1632 = vmul.f32 %v686, %v1630
        %v1633 = vmul.f32 %v687, %v1630
        %v1634 = vmul.f32 %v688, %v1630
        %v1635 = vadd.f32 %v1625, %v1631
        %v1636 = vadd.f32 %v1626, %v1632
        %v1637 = vadd.f32 %v1627, %v1633
        %v1638 = vadd.f32 %v1628, %v1634
        %s1639 = sld [smem:[#allocation9 + $0x382]]
        %v1640 = vstv %s1639
        %v1641 = vmul.f32 %v862, %v1640
        %v1642 = vmul.f32 %v863, %v1640
        %v1643 = vmul.f32 %v864, %v1640
        %v1644 = vmul.f32 %v865, %v1640
        %v1645 = vadd.f32 %v1635, %v1641
        %v1646 = vadd.f32 %v1636, %v1642
        %v1647 = vadd.f32 %v1637, %v1643
        %v1648 = vadd.f32 %v1638, %v1644
        %s1649 = sld [smem:[#allocation9 + $0x383]]
        %v1650 = vstv %s1649
        %v1651 = vmul.f32 %v1039, %v1650
        %v1652 = vmul.f32 %v1040, %v1650
        %v1653 = vmul.f32 %v1041, %v1650
        %v1654 = vmul.f32 %v1042, %v1650
        %v1655 = vadd.f32 %v1645, %v1651
        %v1656 = vadd.f32 %v1646, %v1652
        %v1657 = vadd.f32 %v1647, %v1653
        %v1658 = vadd.f32 %v1648, %v1654
        %s1659 = sld [smem:[#allocation11 + $0x7]]
        %v1660 = vstv %s1659
        %v1661 = vadd.f32 %v1655, %v1660
        %v1662 = vadd.f32 %v1656, %v1660
        %v1663 = vadd.f32 %v1657, %v1660
        %v1664 = vadd.f32 %v1658, %v1660
        %v1665 = vmul.f32 %v1661, 0.044715
        %v1666 = vmul.f32 %v1662, 0.044715
        %v1667 = vmul.f32 %v1663, 0.044715
        %v1668 = vmul.f32 %v1664, 0.044715
        %v1669 = vmul.f32 %v1665, %v1661
        %v1670 = vmul.f32 %v1666, %v1662
        %v1671 = vmul.f32 %v1667, %v1663
        %v1672 = vmul.f32 %v1668, %v1664
        %v1673 = vmul.f32 %v1669, %v1661
        %v1674 = vmul.f32 %v1670, %v1662
        %v1675 = vmul.f32 %v1671, %v1663
        %v1676 = vmul.f32 %v1672, %v1664
        %v1677 = vadd.f32 %v1661, %v1673
        %v1678 = vadd.f32 %v1662, %v1674
        %v1679 = vadd.f32 %v1663, %v1675
        %v1680 = vadd.f32 %v1664, %v1676
        %v1681 = vmul.f32 %v1677, 0.7978846
        %v1682 = vmul.f32 %v1678, 0.7978846
        %v1683 = vmul.f32 %v1679, 0.7978846
        %v1684 = vmul.f32 %v1680, 0.7978846
        %v1685 = vtanh.pop %v1681
        %v1686 = vtanh.pop %v1682
        %v1687 = vtanh.pop %v1683
        %v1688 = vtanh.pop %v1684
        %v1689 = vmul.f32 %v1661, 0.5
        %v1690 = vmul.f32 %v1662, 0.5
        %v1691 = vmul.f32 %v1663, 0.5
        %v1692 = vmul.f32 %v1664, 0.5
        %v1693 = vadd.f32 %v1685, 1.0
        %v1694 = vadd.f32 %v1686, 1.0
        %v1695 = vadd.f32 %v1687, 1.0
        %v1696 = vadd.f32 %v1688, 1.0
        %v1697 = vmul.f32 %v1689, %v1693
        %v1698 = vmul.f32 %v1690, %v1694
        %v1699 = vmul.f32 %v1691, %v1695
        %v1700 = vmul.f32 %v1692, %v1696
        %s1701 = scalar_lea.vmem %s296, 224 [#allocation12]
        %1702 = vst [vmem:[%s1701] sm:$0xff] %v1697
        %1703 = vst [vmem:[%s1701 + $0x8] sm:$0xff] %v1698
        %1704 = vst [vmem:[%s1701 + $0x10] sm:$0xff] %v1699
        %1705 = vst [vmem:[%s1701 + $0x18] sm:$0xff] %v1700
        %s1706 = sand.u32 %s143, 1
        %s1707 = scalar_lea.sflag [#allocation4], %s1706
        %s1708 = sand.u32 %s143, 1
        %s1709 = smul.addr %s1708, 256
        %s1710 = scalar_lea.vmem [#allocation12], %s1709
        // Predicated region
        $region61: #{tpu_custom_call.1} parent=39 // pred_check
          %p1711 = pneg %p153
        $region62: #{tpu_custom_call.1} parent=39 // pred_check_branch
          %1713 = sbr.rel (%p1711) target = $region64
        $region63: #{tpu_custom_call.1} parent=39 // pred_region
          %s1715 = ssub.s32 4096, 4096
          %1716 = vsyncadd %s1707, %s1715
          %s1717 = smul.addr %s25, 32
          %s1718 = smul.addr %s1717, 128
          %s1719 = scalar_lea.hbm %s5, %s1718
          %s1720 = sshll.u32 %s1710, 4
          %s1721 = int_to_ptr.vmem [resolvable:$true] %s1720
          %1726 = dma.vmem_to_hbm [thread:$0]  %s1721, 4096, %s1719, %s1707, 256, 256, 16
        $region64: #{tpu_custom_call.1} parent=39 // pred_fallthru
          _
      $region40: #{tpu_custom_call.1} parent=5 // pred_fallthru
        _
      %p1727 = scmp.le.s32.totalorder 2, %s20
      // Predicated region
      $region65: #{tpu_custom_call.1} parent=5 // pred_check
        %p1728 = pneg %p1727
      $region66: #{tpu_custom_call.1} parent=5 // pred_check_branch
        %1730 = sbr.rel (%p1728) target = $region68
      $region67: #{tpu_custom_call.1} parent=5 // pred_region
        %s1731 = ssub.s32 %s20, 2
        // Predicated region
        $region69: #{tpu_custom_call.1} parent=67 // pred_check
          %p1732 = pneg %p159
        $region70: #{tpu_custom_call.1} parent=67 // pred_check_branch
          %1734 = sbr.rel (%p1732) target = $region72
        $region71: #{tpu_custom_call.1} parent=67 // pred_region
          %s1735 = sand.u32 %s144, 1
          %s1736 = scalar_lea.sflag [#allocation4], %s1735
          %s1737 = sand.u32 %s144, 1
          %s1738 = smul.addr %s1737, 256
          %s1739 = scalar_lea.vmem [#allocation12], %s1738
          %1740 = dma.done %s1736, 4096
        $region72: #{tpu_custom_call.1} parent=67 // pred_fallthru
          _
      $region68: #{tpu_custom_call.1} parent=5 // pred_fallthru
        _
    $region6: #{tpu_custom_call.1} parent=1 // loop_footer
      %s24 = sadd.s32 1, %s20
    $region7: #{tpu_custom_call.1} parent=1 // loop_footer_branch
      %19 = sbr.rel target = $region3
    $region8: #{tpu_custom_call.1} parent=1 // loop_exit
      _
    %1741 = vsyncpa [#allocation3], 1
    %s1742 = scalar_lea.sflag [#allocation3], 1
    %1743 = vsyncpa %s1742, 1
    %1744 = vsyncpa [#allocation7], 1
    %1745 = vsyncpa [#allocation4], 1
    %s1746 = scalar_lea.sflag [#allocation4], 1
    %1747 = vsyncpa %s1746, 1
    %1748 = vsyncpa [#allocation5], 1
    %s1749 = scalar_lea.sflag [#allocation5], 1
    %1750 = vsyncpa %s1749, 1
    %1751 = vsyncpa [#allocation10], 1

</llo_original>
